<compile_context>
chip_gen: v7x
topology: tpu7x:2x2x1
jax: 0.10.0
libtpu: 0.0.40
codegen_flags: <defaults>
</compile_context>

<pallas_src>
import functools

import jax
import jax.numpy as jnp
from jax import lax
from jax.experimental import pallas as pl


def _layernorm(x, g, b, eps=1e-5):
    mu = jnp.mean(x, axis=-1, keepdims=True)
    var = jnp.mean((x - mu) ** 2, axis=-1, keepdims=True)
    return (x - mu) * lax.rsqrt(var + eps) * g + b


def _encoder_stack_kernel(x_ref, w_qkv_ref, w_o_ref, w_f1_ref, w_f2_ref, b_ref,
                          out_ref, *, batch, seq, nheads, d_k):
    f32, bf16 = jnp.float32, jnp.bfloat16
    x = x_ref[...].astype(f32)                 # (B*S, D)
    BS, D = x.shape
    HD = nheads * d_k
    L = w_qkv_ref.shape[0]                     # number of fused encoder blocks
    inv_sqrt_dk = 1.0 / (float(d_k) ** 0.5)

    for l in range(L):                         # static unroll over the (tiny) stack
        w_qkv = w_qkv_ref[l]                   # (D, 3*HD)   bf16, fused Q|K|V proj
        w_o = w_o_ref[l]                       # (HD, D)     bf16
        w_f1 = w_f1_ref[l]                     # (D, d_ff)   bf16
        w_f2 = w_f2_ref[l]                     # (d_ff, D)   bf16
        bias = b_ref[l]                        # (8, W)      f32 packed bias/LN slab
        d_ff = w_f1.shape[1]

        b_qkv = bias[0:1, :3 * HD]
        bo = bias[1:2, :D]
        g1, be1 = bias[2:3, :D], bias[3:4, :D]
        g2, be2 = bias[4:5, :D], bias[5:6, :D]
        bf1 = bias[6:7, :d_ff]
        bf2 = bias[7:8, :D]

        # ---- multi-head self-attention (mask=None; dropouts identity in eval) ----
        # one wide QKV matmul (M = B*S), bf16 operands, f32 accumulation
        qkv = jnp.dot(x.astype(bf16), w_qkv,
                      preferred_element_type=f32) + b_qkv         # (BS, 3HD) f32
        qkv = qkv.reshape(batch, seq, 3 * HD)                     # leading-dim split only

        attn = jnp.zeros((BS, D), f32)
        for h in range(nheads):                # static unroll; batch handled by einsum
            lo = h * d_k
            qh = qkv[:, :, lo:lo + d_k].astype(bf16)
            kh = qkv[:, :, HD + lo:HD + lo + d_k].astype(bf16)
            vh = qkv[:, :, 2 * HD + lo:2 * HD + lo + d_k].astype(bf16)
            # scores = q @ k^T / sqrt(d_k), batched over the batch dim
            s = jnp.einsum('bqd,bkd->bqk', qh, kh,
                           preferred_element_type=f32) * inv_sqrt_dk     # (B,S,S) f32
            # max-subtracted exp-then-normalize == reference softmax (mask=None)
            p = jnp.exp(s - jnp.max(s, axis=-1, keepdims=True))
            p = p / jnp.sum(p, axis=-1, keepdims=True)
            ctx = jnp.einsum('bqk,bkd->bqd', p.astype(bf16), vh,
                             preferred_element_type=f32)                 # (B,S,dk) f32
            # fold the output projection per head -> no concat / relayout needed
            attn = attn + jnp.dot(ctx.reshape(BS, d_k).astype(bf16),
                                  w_o[lo:lo + d_k, :],
                                  preferred_element_type=f32)
        attn = attn + bo

        # ---- residual + LayerNorm 1 (f32 elementwise) ----
        x = _layernorm(x + attn, g1, be1)

        # ---- position-wise feed-forward + residual + LayerNorm 2 ----
        hid = jnp.maximum(jnp.dot(x.astype(bf16), w_f1,
                                  preferred_element_type=f32) + bf1, 0.0)
        ffn = jnp.dot(hid.astype(bf16), w_f2,
                      preferred_element_type=f32) + bf2
        x = _layernorm(x + ffn, g2, be2)

    out_ref[...] = x.astype(out_ref.dtype)


def transformer_encoder(x, params, *, nheads):
    """Run the fused encoder stack in a single (grid-less) pallas_call; every array is
    one full VMEM-resident block. Batch is folded into the matmul M dimension."""
    w_qkv, w_o, w_f1, w_f2, biases = params
    B, S, D = x.shape
    HD = w_qkv.shape[2] // 3
    d_k = HD // nheads

    kernel = functools.partial(_encoder_stack_kernel,
                               batch=B, seq=S, nheads=nheads, d_k=d_k)
    out = pl.pallas_call(
        kernel,
        out_shape=jax.ShapeDtypeStruct((B * S, D), x.dtype),
    )(x.reshape(B * S, D), w_qkv, w_o, w_f1, w_f2, biases)
    return out.reshape(B, S, D)


# ------------- deterministic parameter init (PyTorch nn.Linear-style), packed -------------
def _init_linear(key, fan_in, fan_out):
    kw, kb = jax.random.split(key)
    bound = 1.0 / (fan_in ** 0.5)
    w = jax.random.uniform(kw, (fan_in, fan_out), jnp.float32, -bound, bound)
    b = jax.random.uniform(kb, (fan_out,), jnp.float32, -bound, bound)
    return w, b


def init_encoder_params(key, d_model, d_k, d_ff, nheads, nblocks=1):
    HD = nheads * d_k
    W = max(3 * HD, d_ff, d_model)             # lane width of the packed bias slab
    w_qkv_l, w_o_l, w_f1_l, w_f2_l, bias_l = [], [], [], [], []
    for kb in jax.random.split(key, nblocks):
        ks = jax.random.split(kb, 3 * nheads + 3)
        wq, wk, wv, bq, bk, bv = [], [], [], [], [], []
        for h in range(nheads):
            w, b = _init_linear(ks[3 * h + 0], d_model, d_k); wq.append(w); bq.append(b)
            w, b = _init_linear(ks[3 * h + 1], d_model, d_k); wk.append(w); bk.append(b)
            w, b = _init_linear(ks[3 * h + 2], d_model, d_k); wv.append(w); bv.append(b)
        wo, bo = _init_linear(ks[-3], HD, d_model)
        wf1, bf1 = _init_linear(ks[-2], d_model, d_ff)
        wf2, bf2 = _init_linear(ks[-1], d_ff, d_model)

        w_qkv = jnp.concatenate([jnp.concatenate(wq, 1),
                                 jnp.concatenate(wk, 1),
                                 jnp.concatenate(wv, 1)], axis=1)      # (D, 3*HD)
        b_qkv = jnp.concatenate(bq + bk + bv)                          # (3*HD,)

        bias = jnp.zeros((8, W), jnp.float32)
        bias = bias.at[0, :3 * HD].set(b_qkv)
        bias = bias.at[1, :d_model].set(bo)
        bias = bias.at[2, :d_model].set(1.0)    # LayerNorm1 gamma (beta row 3 = 0)
        bias = bias.at[4, :d_model].set(1.0)    # LayerNorm2 gamma (beta row 5 = 0)
        bias = bias.at[6, :d_ff].set(bf1)
        bias = bias.at[7, :d_model].set(bf2)

        w_qkv_l.append(w_qkv); w_o_l.append(wo)
        w_f1_l.append(wf1); w_f2_l.append(wf2); bias_l.append(bias)

    # weight slabs in bf16 for the MXU; bias / LayerNorm slab stays f32 (elementwise path)
    return (jnp.stack(w_qkv_l).astype(jnp.bfloat16),
            jnp.stack(w_o_l).astype(jnp.bfloat16),
            jnp.stack(w_f1_l).astype(jnp.bfloat16),
            jnp.stack(w_f2_l).astype(jnp.bfloat16),
            jnp.stack(bias_l))


# ------------- plain-JAX reference (same math & casts, PyTorch eval semantics) -------------
def _ref_encoder(x, params, nheads):
    w_qkv, w_o, w_f1, w_f2, biases = params
    f32, bf16 = jnp.float32, jnp.bfloat16
    L, D, HD3 = w_qkv.shape
    HD = HD3 // 3
    d_k = HD // nheads
    d_ff = w_f1.shape[2]
    x = x.astype(f32)

    def ln(v, g, b, eps=1e-5):
        mu = v.mean(-1, keepdims=True)
        var = ((v - mu) ** 2).mean(-1, keepdims=True)
        return (v - mu) / jnp.sqrt(var + eps) * g + b

    for l in range(L):
        bias = biases[l]
        b_qkv = bias[0, :3 * HD]; bo = bias[1, :D]
        g1, be1 = bias[2, :D], bias[3, :D]
        g2, be2 = bias[4, :D], bias[5, :D]
        bf1 = bias[6, :d_ff]; bf2 = bias[7, :D]

        qkv = jnp.einsum('bsd,df->bsf', x.astype(bf16), w_qkv[l],
                         preferred_element_type=f32) + b_qkv
        heads = []
        for h in range(nheads):
            lo = h * d_k
            qh = qkv[..., lo:lo + d_k].astype(bf16)
            kh = qkv[..., HD + lo:HD + lo + d_k].astype(bf16)
            vh = qkv[..., 2 * HD + lo:2 * HD + lo + d_k].astype(bf16)
            s = jnp.einsum('bqd,bkd->bqk', qh, kh,
                           preferred_element_type=f32) / jnp.sqrt(jnp.float32(d_k))
            p = jnp.exp(s - s.max(-1, keepdims=True))     # == exp(s)/sum(exp(s))
            p = p / p.sum(-1, keepdims=True)
            heads.append(jnp.einsum('bqk,bkd->bqd', p.astype(bf16), vh,
                                    preferred_element_type=f32))
        attn = jnp.einsum('bsk,kd->bsd', jnp.concatenate(heads, -1).astype(bf16),
                          w_o[l], preferred_element_type=f32) + bo
        x = ln(x + attn, g1, be1)
        hid = jnp.maximum(jnp.einsum('bsd,df->bsf', x.astype(bf16), w_f1[l],
                                     preferred_element_type=f32) + bf1, 0.0)
        ffn = jnp.einsum('bsf,fd->bsd', hid.astype(bf16), w_f2[l],
                         preferred_element_type=f32) + bf2
        x = ln(x + ffn, g2, be2)
    return x


if __name__ == "__main__":
    d_model, d_k, d_ff, nheads = 32, 16, 64, 4
    B, S = 2, 8
    nblocks = 1   # the PyTorch spec is a single TransformerEncoderBlock

    key = jax.random.PRNGKey(0)
    kx, kp = jax.random.split(key)
    x = jax.random.normal(kx, (B, S, d_model), jnp.float32)
    params = init_encoder_params(kp, d_model, d_k, d_ff, nheads, nblocks)

    out = transformer_encoder(x, params, nheads=nheads)
    out = jax.block_until_ready(out)

    ref = _ref_encoder(x, params, nheads)
    assert out.shape == (B, S, d_model)
    err = float(jnp.max(jnp.abs(out - ref)))
    # reference mirrors the kernel's bf16-operand / f32-accumulate casts, so residual
    # error only comes from accumulation order and EUP exp/rsqrt vs XLA intrinsics.
    assert err < 5e-3, err

    print("KERNEL_OK")
</pallas_src>

<mosaic_0001>
module attributes {stable_mosaic.version = 11 : i64} {
  func.func @_encoder_stack_kernel(%arg0: memref<16x32xf32, #tpu.memory_space<vmem>>, %arg1: memref<1x32x192xbf16, #tpu.memory_space<vmem>>, %arg2: memref<1x64x32xbf16, #tpu.memory_space<vmem>>, %arg3: memref<1x32x64xbf16, #tpu.memory_space<vmem>>, %arg4: memref<1x64x32xbf16, #tpu.memory_space<vmem>>, %arg5: memref<1x8x192xf32, #tpu.memory_space<vmem>>, %arg6: memref<16x32xf32, #tpu.memory_space<vmem>>) attributes {dimension_semantics = [], scalar_prefetch = 0 : i64, scratch_operands = 0 : i64, tpu.core_type = #tpu.core_type<tc>} {
    %c0 = arith.constant 0 : index
    %c0_0 = arith.constant 0 : index
    %0 = vector.load %arg0[%c0, %c0_0] : memref<16x32xf32, #tpu.memory_space<vmem>>, vector<16x32xf32>
    %c0_1 = arith.constant 0 : index
    %c0_2 = arith.constant 0 : index
    %c0_3 = arith.constant 0 : index
    %1 = vector.load %arg1[%c0_1, %c0_2, %c0_3] : memref<1x32x192xbf16, #tpu.memory_space<vmem>>, vector<1x32x192xbf16>
    %2 = vector.shape_cast %1 : vector<1x32x192xbf16> to vector<32x192xbf16>
    %c0_4 = arith.constant 0 : index
    %c0_5 = arith.constant 0 : index
    %c0_6 = arith.constant 0 : index
    %3 = vector.load %arg2[%c0_4, %c0_5, %c0_6] : memref<1x64x32xbf16, #tpu.memory_space<vmem>>, vector<1x64x32xbf16>
    %4 = vector.shape_cast %3 : vector<1x64x32xbf16> to vector<64x32xbf16>
    %c0_7 = arith.constant 0 : index
    %c0_8 = arith.constant 0 : index
    %c0_9 = arith.constant 0 : index
    %5 = vector.load %arg3[%c0_7, %c0_8, %c0_9] : memref<1x32x64xbf16, #tpu.memory_space<vmem>>, vector<1x32x64xbf16>
    %6 = vector.shape_cast %5 : vector<1x32x64xbf16> to vector<32x64xbf16>
    %c0_10 = arith.constant 0 : index
    %c0_11 = arith.constant 0 : index
    %c0_12 = arith.constant 0 : index
    %7 = vector.load %arg4[%c0_10, %c0_11, %c0_12] : memref<1x64x32xbf16, #tpu.memory_space<vmem>>, vector<1x64x32xbf16>
    %8 = vector.shape_cast %7 : vector<1x64x32xbf16> to vector<64x32xbf16>
    %c0_13 = arith.constant 0 : index
    %c0_14 = arith.constant 0 : index
    %c0_15 = arith.constant 0 : index
    %9 = vector.load %arg5[%c0_13, %c0_14, %c0_15] : memref<1x8x192xf32, #tpu.memory_space<vmem>>, vector<1x8x192xf32>
    %10 = vector.shape_cast %9 : vector<1x8x192xf32> to vector<8x192xf32>
    %11 = vector.extract_strided_slice %10 {offsets = [0, 0], sizes = [1, 192], strides = [1, 1]} : vector<8x192xf32> to vector<1x192xf32>
    %12 = vector.extract_strided_slice %10 {offsets = [1, 0], sizes = [1, 32], strides = [1, 1]} : vector<8x192xf32> to vector<1x32xf32>
    %13 = vector.extract_strided_slice %10 {offsets = [2, 0], sizes = [1, 32], strides = [1, 1]} : vector<8x192xf32> to vector<1x32xf32>
    %14 = vector.extract_strided_slice %10 {offsets = [3, 0], sizes = [1, 32], strides = [1, 1]} : vector<8x192xf32> to vector<1x32xf32>
    %15 = vector.extract_strided_slice %10 {offsets = [4, 0], sizes = [1, 32], strides = [1, 1]} : vector<8x192xf32> to vector<1x32xf32>
    %16 = vector.extract_strided_slice %10 {offsets = [5, 0], sizes = [1, 32], strides = [1, 1]} : vector<8x192xf32> to vector<1x32xf32>
    %17 = vector.extract_strided_slice %10 {offsets = [6, 0], sizes = [1, 64], strides = [1, 1]} : vector<8x192xf32> to vector<1x64xf32>
    %18 = vector.extract_strided_slice %10 {offsets = [7, 0], sizes = [1, 32], strides = [1, 1]} : vector<8x192xf32> to vector<1x32xf32>
    %19 = arith.truncf %0 : vector<16x32xf32> to vector<16x32xbf16>
    %cst = arith.constant dense<0.000000e+00> : vector<16x192xf32>
    %20 = tpu.matmul %19, %2, %cst {dimension_numbers = #tpu.dot_dimension_numbers<[1], [0], [0], [1], [0, 0, 1, 1], [], []>} : vector<16x32xbf16>, vector<32x192xbf16>, vector<16x192xf32> -> vector<16x192xf32>
    %21 = vector.broadcast %11 : vector<1x192xf32> to vector<16x192xf32>
    %22 = arith.addf %20, %21 : vector<16x192xf32>
    %23 = vector.shape_cast %22 : vector<16x192xf32> to vector<2x8x192xf32>
    %cst_16 = arith.constant 0.000000e+00 : f32
    %24 = vector.broadcast %cst_16 : f32 to vector<16x32xf32>
    %25 = vector.extract_strided_slice %23 {offsets = [0, 0, 0], sizes = [2, 8, 16], strides = [1, 1, 1]} : vector<2x8x192xf32> to vector<2x8x16xf32>
    %26 = arith.truncf %25 : vector<2x8x16xf32> to vector<2x8x16xbf16>
    %27 = vector.extract_strided_slice %23 {offsets = [0, 0, 64], sizes = [2, 8, 16], strides = [1, 1, 1]} : vector<2x8x192xf32> to vector<2x8x16xf32>
    %28 = arith.truncf %27 : vector<2x8x16xf32> to vector<2x8x16xbf16>
    %29 = vector.extract_strided_slice %23 {offsets = [0, 0, 128], sizes = [2, 8, 16], strides = [1, 1, 1]} : vector<2x8x192xf32> to vector<2x8x16xf32>
    %30 = arith.truncf %29 : vector<2x8x16xf32> to vector<2x8x16xbf16>
    "tpu.trace_start"() <{level = 10 : i32, message = "bqd,bkd->bqk"}> : () -> ()
    %cst_17 = arith.constant dense<0.000000e+00> : vector<2x8x8xf32>
    %31 = tpu.matmul %26, %28, %cst_17 {dimension_numbers = #tpu.dot_dimension_numbers<[2], [2], [1], [1], [0, 0, 0, 1, 1, 1], [0], [0]>} : vector<2x8x16xbf16>, vector<2x8x16xbf16>, vector<2x8x8xf32> -> vector<2x8x8xf32>
    "tpu.trace_stop"() : () -> ()
    %cst_18 = arith.constant 2.500000e-01 : f32
    %32 = vector.broadcast %cst_18 : f32 to vector<2x8x8xf32>
    %33 = arith.mulf %31, %32 : vector<2x8x8xf32>
    %cst_19 = arith.constant dense<0xFF800000> : vector<2x8xf32>
    %34 = vector.multi_reduction <maximumf>, %33, %cst_19 [2] : vector<2x8x8xf32> to vector<2x8xf32>
    %35 = vector.shape_cast %34 : vector<2x8xf32> to vector<2x8x1xf32>
    %36 = vector.broadcast %35 : vector<2x8x1xf32> to vector<2x8x8xf32>
    %37 = arith.subf %33, %36 : vector<2x8x8xf32>
    %38 = math.exp %37 : vector<2x8x8xf32>
    %cst_20 = arith.constant dense<0.000000e+00> : vector<2x8xf32>
    %39 = vector.multi_reduction <add>, %38, %cst_20 [2] : vector<2x8x8xf32> to vector<2x8xf32>
    %40 = vector.shape_cast %39 : vector<2x8xf32> to vector<2x8x1xf32>
    %41 = vector.broadcast %40 : vector<2x8x1xf32> to vector<2x8x8xf32>
    %42 = arith.divf %38, %41 : vector<2x8x8xf32>
    %43 = arith.truncf %42 : vector<2x8x8xf32> to vector<2x8x8xbf16>
    "tpu.trace_start"() <{level = 10 : i32, message = "bqk,bkd->bqd"}> : () -> ()
    %cst_21 = arith.constant dense<0.000000e+00> : vector<2x8x16xf32>
    %44 = tpu.matmul %43, %30, %cst_21 {dimension_numbers = #tpu.dot_dimension_numbers<[2], [1], [1], [2], [0, 0, 0, 1, 1, 2], [0], [0]>} : vector<2x8x8xbf16>, vector<2x8x16xbf16>, vector<2x8x16xf32> -> vector<2x8x16xf32>
    "tpu.trace_stop"() : () -> ()
    %45 = vector.shape_cast %44 : vector<2x8x16xf32> to vector<16x16xf32>
    %46 = arith.truncf %45 : vector<16x16xf32> to vector<16x16xbf16>
    %47 = vector.extract_strided_slice %4 {offsets = [0, 0], sizes = [16, 32], strides = [1, 1]} : vector<64x32xbf16> to vector<16x32xbf16>
    %cst_22 = arith.constant dense<0.000000e+00> : vector<16x32xf32>
    %48 = tpu.matmul %46, %47, %cst_22 {dimension_numbers = #tpu.dot_dimension_numbers<[1], [0], [0], [1], [0, 0, 1, 1], [], []>} : vector<16x16xbf16>, vector<16x32xbf16>, vector<16x32xf32> -> vector<16x32xf32>
    %49 = arith.addf %24, %48 : vector<16x32xf32>
    %50 = vector.extract_strided_slice %23 {offsets = [0, 0, 16], sizes = [2, 8, 16], strides = [1, 1, 1]} : vector<2x8x192xf32> to vector<2x8x16xf32>
    %51 = arith.truncf %50 : vector<2x8x16xf32> to vector<2x8x16xbf16>
    %52 = vector.extract_strided_slice %23 {offsets = [0, 0, 80], sizes = [2, 8, 16], strides = [1, 1, 1]} : vector<2x8x192xf32> to vector<2x8x16xf32>
    %53 = arith.truncf %52 : vector<2x8x16xf32> to vector<2x8x16xbf16>
    %54 = vector.extract_strided_slice %23 {offsets = [0, 0, 144], sizes = [2, 8, 16], strides = [1, 1, 1]} : vector<2x8x192xf32> to vector<2x8x16xf32>
    %55 = arith.truncf %54 : vector<2x8x16xf32> to vector<2x8x16xbf16>
    "tpu.trace_start"() <{level = 10 : i32, message = "bqd,bkd->bqk"}> : () -> ()
    %cst_23 = arith.constant dense<0.000000e+00> : vector<2x8x8xf32>
    %56 = tpu.matmul %51, %53, %cst_23 {dimension_numbers = #tpu.dot_dimension_numbers<[2], [2], [1], [1], [0, 0, 0, 1, 1, 1], [0], [0]>} : vector<2x8x16xbf16>, vector<2x8x16xbf16>, vector<2x8x8xf32> -> vector<2x8x8xf32>
    "tpu.trace_stop"() : () -> ()
    %cst_24 = arith.constant 2.500000e-01 : f32
    %57 = vector.broadcast %cst_24 : f32 to vector<2x8x8xf32>
    %58 = arith.mulf %56, %57 : vector<2x8x8xf32>
    %cst_25 = arith.constant dense<0xFF800000> : vector<2x8xf32>
    %59 = vector.multi_reduction <maximumf>, %58, %cst_25 [2] : vector<2x8x8xf32> to vector<2x8xf32>
    %60 = vector.shape_cast %59 : vector<2x8xf32> to vector<2x8x1xf32>
    %61 = vector.broadcast %60 : vector<2x8x1xf32> to vector<2x8x8xf32>
    %62 = arith.subf %58, %61 : vector<2x8x8xf32>
    %63 = math.exp %62 : vector<2x8x8xf32>
    %cst_26 = arith.constant dense<0.000000e+00> : vector<2x8xf32>
    %64 = vector.multi_reduction <add>, %63, %cst_26 [2] : vector<2x8x8xf32> to vector<2x8xf32>
    %65 = vector.shape_cast %64 : vector<2x8xf32> to vector<2x8x1xf32>
    %66 = vector.broadcast %65 : vector<2x8x1xf32> to vector<2x8x8xf32>
    %67 = arith.divf %63, %66 : vector<2x8x8xf32>
    %68 = arith.truncf %67 : vector<2x8x8xf32> to vector<2x8x8xbf16>
    "tpu.trace_start"() <{level = 10 : i32, message = "bqk,bkd->bqd"}> : () -> ()
    %cst_27 = arith.constant dense<0.000000e+00> : vector<2x8x16xf32>
    %69 = tpu.matmul %68, %55, %cst_27 {dimension_numbers = #tpu.dot_dimension_numbers<[2], [1], [1], [2], [0, 0, 0, 1, 1, 2], [0], [0]>} : vector<2x8x8xbf16>, vector<2x8x16xbf16>, vector<2x8x16xf32> -> vector<2x8x16xf32>
    "tpu.trace_stop"() : () -> ()
    %70 = vector.shape_cast %69 : vector<2x8x16xf32> to vector<16x16xf32>
    %71 = arith.truncf %70 : vector<16x16xf32> to vector<16x16xbf16>
    %72 = vector.extract_strided_slice %4 {offsets = [16, 0], sizes = [16, 32], strides = [1, 1]} : vector<64x32xbf16> to vector<16x32xbf16>
    %cst_28 = arith.constant dense<0.000000e+00> : vector<16x32xf32>
    %73 = tpu.matmul %71, %72, %cst_28 {dimension_numbers = #tpu.dot_dimension_numbers<[1], [0], [0], [1], [0, 0, 1, 1], [], []>} : vector<16x16xbf16>, vector<16x32xbf16>, vector<16x32xf32> -> vector<16x32xf32>
    %74 = arith.addf %49, %73 : vector<16x32xf32>
    %75 = vector.extract_strided_slice %23 {offsets = [0, 0, 32], sizes = [2, 8, 16], strides = [1, 1, 1]} : vector<2x8x192xf32> to vector<2x8x16xf32>
    %76 = arith.truncf %75 : vector<2x8x16xf32> to vector<2x8x16xbf16>
    %77 = vector.extract_strided_slice %23 {offsets = [0, 0, 96], sizes = [2, 8, 16], strides = [1, 1, 1]} : vector<2x8x192xf32> to vector<2x8x16xf32>
    %78 = arith.truncf %77 : vector<2x8x16xf32> to vector<2x8x16xbf16>
    %79 = vector.extract_strided_slice %23 {offsets = [0, 0, 160], sizes = [2, 8, 16], strides = [1, 1, 1]} : vector<2x8x192xf32> to vector<2x8x16xf32>
    %80 = arith.truncf %79 : vector<2x8x16xf32> to vector<2x8x16xbf16>
    "tpu.trace_start"() <{level = 10 : i32, message = "bqd,bkd->bqk"}> : () -> ()
    %cst_29 = arith.constant dense<0.000000e+00> : vector<2x8x8xf32>
    %81 = tpu.matmul %76, %78, %cst_29 {dimension_numbers = #tpu.dot_dimension_numbers<[2], [2], [1], [1], [0, 0, 0, 1, 1, 1], [0], [0]>} : vector<2x8x16xbf16>, vector<2x8x16xbf16>, vector<2x8x8xf32> -> vector<2x8x8xf32>
    "tpu.trace_stop"() : () -> ()
    %cst_30 = arith.constant 2.500000e-01 : f32
    %82 = vector.broadcast %cst_30 : f32 to vector<2x8x8xf32>
    %83 = arith.mulf %81, %82 : vector<2x8x8xf32>
    %cst_31 = arith.constant dense<0xFF800000> : vector<2x8xf32>
    %84 = vector.multi_reduction <maximumf>, %83, %cst_31 [2] : vector<2x8x8xf32> to vector<2x8xf32>
    %85 = vector.shape_cast %84 : vector<2x8xf32> to vector<2x8x1xf32>
    %86 = vector.broadcast %85 : vector<2x8x1xf32> to vector<2x8x8xf32>
    %87 = arith.subf %83, %86 : vector<2x8x8xf32>
    %88 = math.exp %87 : vector<2x8x8xf32>
    %cst_32 = arith.constant dense<0.000000e+00> : vector<2x8xf32>
    %89 = vector.multi_reduction <add>, %88, %cst_32 [2] : vector<2x8x8xf32> to vector<2x8xf32>
    %90 = vector.shape_cast %89 : vector<2x8xf32> to vector<2x8x1xf32>
    %91 = vector.broadcast %90 : vector<2x8x1xf32> to vector<2x8x8xf32>
    %92 = arith.divf %88, %91 : vector<2x8x8xf32>
    %93 = arith.truncf %92 : vector<2x8x8xf32> to vector<2x8x8xbf16>
    "tpu.trace_start"() <{level = 10 : i32, message = "bqk,bkd->bqd"}> : () -> ()
    %cst_33 = arith.constant dense<0.000000e+00> : vector<2x8x16xf32>
    %94 = tpu.matmul %93, %80, %cst_33 {dimension_numbers = #tpu.dot_dimension_numbers<[2], [1], [1], [2], [0, 0, 0, 1, 1, 2], [0], [0]>} : vector<2x8x8xbf16>, vector<2x8x16xbf16>, vector<2x8x16xf32> -> vector<2x8x16xf32>
    "tpu.trace_stop"() : () -> ()
    %95 = vector.shape_cast %94 : vector<2x8x16xf32> to vector<16x16xf32>
    %96 = arith.truncf %95 : vector<16x16xf32> to vector<16x16xbf16>
    %97 = vector.extract_strided_slice %4 {offsets = [32, 0], sizes = [16, 32], strides = [1, 1]} : vector<64x32xbf16> to vector<16x32xbf16>
    %cst_34 = arith.constant dense<0.000000e+00> : vector<16x32xf32>
    %98 = tpu.matmul %96, %97, %cst_34 {dimension_numbers = #tpu.dot_dimension_numbers<[1], [0], [0], [1], [0, 0, 1, 1], [], []>} : vector<16x16xbf16>, vector<16x32xbf16>, vector<16x32xf32> -> vector<16x32xf32>
    %99 = arith.addf %74, %98 : vector<16x32xf32>
    %100 = vector.extract_strided_slice %23 {offsets = [0, 0, 48], sizes = [2, 8, 16], strides = [1, 1, 1]} : vector<2x8x192xf32> to vector<2x8x16xf32>
    %101 = arith.truncf %100 : vector<2x8x16xf32> to vector<2x8x16xbf16>
    %102 = vector.extract_strided_slice %23 {offsets = [0, 0, 112], sizes = [2, 8, 16], strides = [1, 1, 1]} : vector<2x8x192xf32> to vector<2x8x16xf32>
    %103 = arith.truncf %102 : vector<2x8x16xf32> to vector<2x8x16xbf16>
    %104 = vector.extract_strided_slice %23 {offsets = [0, 0, 176], sizes = [2, 8, 16], strides = [1, 1, 1]} : vector<2x8x192xf32> to vector<2x8x16xf32>
    %105 = arith.truncf %104 : vector<2x8x16xf32> to vector<2x8x16xbf16>
    "tpu.trace_start"() <{level = 10 : i32, message = "bqd,bkd->bqk"}> : () -> ()
    %cst_35 = arith.constant dense<0.000000e+00> : vector<2x8x8xf32>
    %106 = tpu.matmul %101, %103, %cst_35 {dimension_numbers = #tpu.dot_dimension_numbers<[2], [2], [1], [1], [0, 0, 0, 1, 1, 1], [0], [0]>} : vector<2x8x16xbf16>, vector<2x8x16xbf16>, vector<2x8x8xf32> -> vector<2x8x8xf32>
    "tpu.trace_stop"() : () -> ()
    %cst_36 = arith.constant 2.500000e-01 : f32
    %107 = vector.broadcast %cst_36 : f32 to vector<2x8x8xf32>
    %108 = arith.mulf %106, %107 : vector<2x8x8xf32>
    %cst_37 = arith.constant dense<0xFF800000> : vector<2x8xf32>
    %109 = vector.multi_reduction <maximumf>, %108, %cst_37 [2] : vector<2x8x8xf32> to vector<2x8xf32>
    %110 = vector.shape_cast %109 : vector<2x8xf32> to vector<2x8x1xf32>
    %111 = vector.broadcast %110 : vector<2x8x1xf32> to vector<2x8x8xf32>
    %112 = arith.subf %108, %111 : vector<2x8x8xf32>
    %113 = math.exp %112 : vector<2x8x8xf32>
    %cst_38 = arith.constant dense<0.000000e+00> : vector<2x8xf32>
    %114 = vector.multi_reduction <add>, %113, %cst_38 [2] : vector<2x8x8xf32> to vector<2x8xf32>
    %115 = vector.shape_cast %114 : vector<2x8xf32> to vector<2x8x1xf32>
    %116 = vector.broadcast %115 : vector<2x8x1xf32> to vector<2x8x8xf32>
    %117 = arith.divf %113, %116 : vector<2x8x8xf32>
    %118 = arith.truncf %117 : vector<2x8x8xf32> to vector<2x8x8xbf16>
    "tpu.trace_start"() <{level = 10 : i32, message = "bqk,bkd->bqd"}> : () -> ()
    %cst_39 = arith.constant dense<0.000000e+00> : vector<2x8x16xf32>
    %119 = tpu.matmul %118, %105, %cst_39 {dimension_numbers = #tpu.dot_dimension_numbers<[2], [1], [1], [2], [0, 0, 0, 1, 1, 2], [0], [0]>} : vector<2x8x8xbf16>, vector<2x8x16xbf16>, vector<2x8x16xf32> -> vector<2x8x16xf32>
    "tpu.trace_stop"() : () -> ()
    %120 = vector.shape_cast %119 : vector<2x8x16xf32> to vector<16x16xf32>
    %121 = arith.truncf %120 : vector<16x16xf32> to vector<16x16xbf16>
    %122 = vector.extract_strided_slice %4 {offsets = [48, 0], sizes = [16, 32], strides = [1, 1]} : vector<64x32xbf16> to vector<16x32xbf16>
    %cst_40 = arith.constant dense<0.000000e+00> : vector<16x32xf32>
    %123 = tpu.matmul %121, %122, %cst_40 {dimension_numbers = #tpu.dot_dimension_numbers<[1], [0], [0], [1], [0, 0, 1, 1], [], []>} : vector<16x16xbf16>, vector<16x32xbf16>, vector<16x32xf32> -> vector<16x32xf32>
    %124 = arith.addf %99, %123 : vector<16x32xf32>
    %125 = vector.broadcast %12 : vector<1x32xf32> to vector<16x32xf32>
    %126 = arith.addf %124, %125 : vector<16x32xf32>
    %127 = arith.addf %0, %126 : vector<16x32xf32>
    %cst_41 = arith.constant dense<0.000000e+00> : vector<16xf32>
    %128 = vector.multi_reduction <add>, %127, %cst_41 [1] : vector<16x32xf32> to vector<16xf32>
    %129 = vector.shape_cast %128 : vector<16xf32> to vector<16x1xf32>
    %cst_42 = arith.constant 3.200000e+01 : f32
    %130 = vector.broadcast %cst_42 : f32 to vector<16x1xf32>
    %131 = arith.divf %129, %130 : vector<16x1xf32>
    %132 = vector.broadcast %131 : vector<16x1xf32> to vector<16x32xf32>
    %133 = arith.subf %127, %132 : vector<16x32xf32>
    %134 = arith.mulf %133, %133 : vector<16x32xf32>
    %cst_43 = arith.constant dense<0.000000e+00> : vector<16xf32>
    %135 = vector.multi_reduction <add>, %134, %cst_43 [1] : vector<16x32xf32> to vector<16xf32>
    %136 = vector.shape_cast %135 : vector<16xf32> to vector<16x1xf32>
    %cst_44 = arith.constant 3.200000e+01 : f32
    %137 = vector.broadcast %cst_44 : f32 to vector<16x1xf32>
    %138 = arith.divf %136, %137 : vector<16x1xf32>
    %139 = vector.broadcast %131 : vector<16x1xf32> to vector<16x32xf32>
    %140 = arith.subf %127, %139 : vector<16x32xf32>
    %cst_45 = arith.constant 9.99999974E-6 : f32
    %141 = vector.broadcast %cst_45 : f32 to vector<16x1xf32>
    %142 = arith.addf %138, %141 : vector<16x1xf32>
    %143 = math.rsqrt %142 : vector<16x1xf32>
    %144 = vector.broadcast %143 : vector<16x1xf32> to vector<16x32xf32>
    %145 = arith.mulf %140, %144 : vector<16x32xf32>
    %146 = vector.broadcast %13 : vector<1x32xf32> to vector<16x32xf32>
    %147 = arith.mulf %145, %146 : vector<16x32xf32>
    %148 = vector.broadcast %14 : vector<1x32xf32> to vector<16x32xf32>
    %149 = arith.addf %147, %148 : vector<16x32xf32>
    %150 = arith.truncf %149 : vector<16x32xf32> to vector<16x32xbf16>
    %cst_46 = arith.constant dense<0.000000e+00> : vector<16x64xf32>
    %151 = tpu.matmul %150, %6, %cst_46 {dimension_numbers = #tpu.dot_dimension_numbers<[1], [0], [0], [1], [0, 0, 1, 1], [], []>} : vector<16x32xbf16>, vector<32x64xbf16>, vector<16x64xf32> -> vector<16x64xf32>
    %152 = vector.broadcast %17 : vector<1x64xf32> to vector<16x64xf32>
    %153 = arith.addf %151, %152 : vector<16x64xf32>
    %cst_47 = arith.constant 0.000000e+00 : f32
    %154 = vector.broadcast %cst_47 : f32 to vector<16x64xf32>
    %155 = arith.maximumf %153, %154 : vector<16x64xf32>
    %156 = arith.truncf %155 : vector<16x64xf32> to vector<16x64xbf16>
    %cst_48 = arith.constant dense<0.000000e+00> : vector<16x32xf32>
    %157 = tpu.matmul %156, %8, %cst_48 {dimension_numbers = #tpu.dot_dimension_numbers<[1], [0], [0], [1], [0, 0, 1, 1], [], []>} : vector<16x64xbf16>, vector<64x32xbf16>, vector<16x32xf32> -> vector<16x32xf32>
    %158 = vector.broadcast %18 : vector<1x32xf32> to vector<16x32xf32>
    %159 = arith.addf %157, %158 : vector<16x32xf32>
    %160 = arith.addf %149, %159 : vector<16x32xf32>
    %cst_49 = arith.constant dense<0.000000e+00> : vector<16xf32>
    %161 = vector.multi_reduction <add>, %160, %cst_49 [1] : vector<16x32xf32> to vector<16xf32>
    %162 = vector.shape_cast %161 : vector<16xf32> to vector<16x1xf32>
    %cst_50 = arith.constant 3.200000e+01 : f32
    %163 = vector.broadcast %cst_50 : f32 to vector<16x1xf32>
    %164 = arith.divf %162, %163 : vector<16x1xf32>
    %165 = vector.broadcast %164 : vector<16x1xf32> to vector<16x32xf32>
    %166 = arith.subf %160, %165 : vector<16x32xf32>
    %167 = arith.mulf %166, %166 : vector<16x32xf32>
    %cst_51 = arith.constant dense<0.000000e+00> : vector<16xf32>
    %168 = vector.multi_reduction <add>, %167, %cst_51 [1] : vector<16x32xf32> to vector<16xf32>
    %169 = vector.shape_cast %168 : vector<16xf32> to vector<16x1xf32>
    %cst_52 = arith.constant 3.200000e+01 : f32
    %170 = vector.broadcast %cst_52 : f32 to vector<16x1xf32>
    %171 = arith.divf %169, %170 : vector<16x1xf32>
    %172 = vector.broadcast %164 : vector<16x1xf32> to vector<16x32xf32>
    %173 = arith.subf %160, %172 : vector<16x32xf32>
    %cst_53 = arith.constant 9.99999974E-6 : f32
    %174 = vector.broadcast %cst_53 : f32 to vector<16x1xf32>
    %175 = arith.addf %171, %174 : vector<16x1xf32>
    %176 = math.rsqrt %175 : vector<16x1xf32>
    %177 = vector.broadcast %176 : vector<16x1xf32> to vector<16x32xf32>
    %178 = arith.mulf %173, %177 : vector<16x32xf32>
    %179 = vector.broadcast %15 : vector<1x32xf32> to vector<16x32xf32>
    %180 = arith.mulf %178, %179 : vector<16x32xf32>
    %181 = vector.broadcast %16 : vector<1x32xf32> to vector<16x32xf32>
    %182 = arith.addf %180, %181 : vector<16x32xf32>
    %c0_54 = arith.constant 0 : index
    %c0_55 = arith.constant 0 : index
    %183 = vector.load %arg6[%c0_54, %c0_55] : memref<16x32xf32, #tpu.memory_space<vmem>>, vector<16x32xf32>
    tpu.vector_store %arg6[%c0_54, %c0_55], %182 {strides = array<i32>} : memref<16x32xf32, #tpu.memory_space<vmem>>, vector<16x32xf32>,
    return
  }
}

</mosaic_0001>

<llo_original>
// kernel: tpu_custom_call.1
$region0: #{tpu_custom_call.1}
  #allocation0 [shape = 'u32[]', space=smem, size = 0x4, offset = 0x4, fixed_abs, tag = 'smem constant byte address 0x4 - core index']
  #allocation1 [shape = 'u32[144,128]{1,0:T(1,128)}', space=vmem, size = 0x12000, scoped, tag = 'internal scratch']
  %s0 = inlined_call_operand.vmem [shape: f32[16,32], index: 0, kind: input, shape index: {}]
  %s1 = inlined_call_operand.vmem [shape: bf16[1,32,192], index: 1, kind: input, shape index: {}]
  %s2 = inlined_call_operand.vmem [shape: bf16[1,64,32], index: 2, kind: input, shape index: {}]
  %s3 = inlined_call_operand.vmem [shape: bf16[1,32,64], index: 3, kind: input, shape index: {}]
  %s4 = inlined_call_operand.vmem [shape: bf16[1,64,32], index: 4, kind: input, shape index: {}]
  %s5 = inlined_call_operand.vmem [shape: f32[1,8,192], index: 5, kind: input, shape index: {}]
  %s6 = inlined_call_operand.hbm [shape: f32[16,32], index: 6, kind: output, shape index: {}]
  %s7 = sld [smem:[#allocation0]]
  $region34: #{tpu_custom_call.1} parent=0
    _
  %s9 = ssub.s32 1, %s7
  %s10 = scalar_select 0, %s9, %s7
  $region1: #{tpu_custom_call.1} parent=0
    #allocation2 [shape = 'u8[8192]{0}', space=vmem, size = 0x2000, scoped, tag = 'output window, operand 0, single buffered']
    #allocation3 [shape = 's32[1]{0}', space=sflag, size = 0x4, scoped, tag = 'scoped memory for tpu_custom_call.1']
    %11 = vsyncpa [#allocation3], 0
    // Predicated region
    $region2: #{tpu_custom_call.1} parent=1 // pred_check
      _
    $region3: #{tpu_custom_call.1} parent=1 // pred_check_branch
      %13 = sbr.rel (0) target = $region5
    $region4: #{tpu_custom_call.1} parent=1 // pred_region
      _
    $region5: #{tpu_custom_call.1} parent=1 // pred_fallthru
      _
    // Predicated region
    $region6: #{tpu_custom_call.1} parent=1 // pred_check
      _
    $region7: #{tpu_custom_call.1} parent=1 // pred_check_branch
      %15 = sbr.rel (0) target = $region9
    $region8: #{tpu_custom_call.1} parent=1 // pred_region
      _
    $region9: #{tpu_custom_call.1} parent=1 // pred_fallthru
      _
    // Predicated region
    $region10: #{tpu_custom_call.1} parent=1 // pred_check
      _
    $region11: #{tpu_custom_call.1} parent=1 // pred_check_branch
      %17 = sbr.rel (0) target = $region13
    $region12: #{tpu_custom_call.1} parent=1 // pred_region
      _
    $region13: #{tpu_custom_call.1} parent=1 // pred_fallthru
      _
    // Predicated region
    $region14: #{tpu_custom_call.1} parent=1 // pred_check
      _
    $region15: #{tpu_custom_call.1} parent=1 // pred_check_branch
      %19 = sbr.rel (0) target = $region17
    $region16: #{tpu_custom_call.1} parent=1 // pred_region
      _
    $region17: #{tpu_custom_call.1} parent=1 // pred_fallthru
      _
    // Predicated region
    $region18: #{tpu_custom_call.1} parent=1 // pred_check
      _
    $region19: #{tpu_custom_call.1} parent=1 // pred_check_branch
      %21 = sbr.rel (0) target = $region21
    $region20: #{tpu_custom_call.1} parent=1 // pred_region
      _
    $region21: #{tpu_custom_call.1} parent=1 // pred_fallthru
      _
    // Predicated region
    $region22: #{tpu_custom_call.1} parent=1 // pred_check
      _
    $region23: #{tpu_custom_call.1} parent=1 // pred_check_branch
      %23 = sbr.rel (0) target = $region25
    $region24: #{tpu_custom_call.1} parent=1 // pred_region
      _
    $region25: #{tpu_custom_call.1} parent=1 // pred_fallthru
      _
    %v25 = vld [vmem:[%s0] sm:$0xff]
    %v26 = vld [vmem:[%s0 + $0x8] sm:$0xff]
    %v27 = vld [vmem:[%s1] sm:$0xff]
    %v28 = vld [vmem:[%s1 + $0x8] sm:$0xff]
    %v29 = vld [vmem:[%s1 + $0x10] sm:$0xff]
    %v30 = vld [vmem:[%s1 + $0x18] sm:$0xff]
    %v31 = vld [vmem:[%s2] sm:$0xf]
    %v32 = vld [vmem:[%s2 + $0x4] sm:$0xf]
    %v33 = vld [vmem:[%s2 + $0x8] sm:$0xf]
    %v34 = vld [vmem:[%s2 + $0xc] sm:$0xf]
    %v35 = vld [vmem:[%s2 + $0x10] sm:$0xf]
    %v36 = vld [vmem:[%s2 + $0x14] sm:$0xf]
    %v37 = vld [vmem:[%s2 + $0x18] sm:$0xf]
    %v38 = vld [vmem:[%s2 + $0x1c] sm:$0xf]
    %v39 = vld [vmem:[%s3] sm:$0xf]
    %v40 = vld [vmem:[%s3 + $0x4] sm:$0xf]
    %v41 = vld [vmem:[%s3 + $0x8] sm:$0xf]
    %v42 = vld [vmem:[%s3 + $0xc] sm:$0xf]
    %v43 = vld [vmem:[%s4] sm:$0xf]
    %v44 = vld [vmem:[%s4 + $0x4] sm:$0xf]
    %v45 = vld [vmem:[%s4 + $0x8] sm:$0xf]
    %v46 = vld [vmem:[%s4 + $0xc] sm:$0xf]
    %v47 = vld [vmem:[%s4 + $0x10] sm:$0xf]
    %v48 = vld [vmem:[%s4 + $0x14] sm:$0xf]
    %v49 = vld [vmem:[%s4 + $0x18] sm:$0xf]
    %v50 = vld [vmem:[%s4 + $0x1c] sm:$0xf]
    %v51 = vld [vmem:[%s5] sm:$0xff]
    %v52 = vld [vmem:[%s5 + $0x8] sm:$0xff]
    %v53 = vpack.c.bf16 %v26, %v25
    %v54 = vlaneseq
    %v55 = vshrl.u32 %v54, 7
    %v56 = vsub.s32 0, %v55
    %v57 = vrot.slane %v51, %v56
    %v58 = vlaneseq
    %v59 = vshrl.u32 %v58, 7
    %v60 = vsub.s32 0, %v59
    %v61 = vrot.slane %v52, %v60
    %v66 = vunpack.c.l.b16 %v27
    %v67 = vunpack.c.h.b16 %v27
    %v68 = vunpack.c.l.b16 %v28
    %v69 = vunpack.c.h.b16 %v28
    %v70 = vunpack.c.l.b16 %v29
    %v71 = vunpack.c.h.b16 %v29
    %v72 = vunpack.c.l.b16 %v30
    %v73 = vunpack.c.h.b16 %v30
    %v74 = vpack.c.b16 %v68, %v66
    %v75 = vpack.c.b16 %v69, %v67
    %v76 = vpack.c.b16 %v72, %v70
    %v77 = vpack.c.b16 %v73, %v71
    %vm82 = vcmask 261120
    %v84 = vsel %vm82, %v53, 0
    %86 = vmatprep.subr.bf16.mxu0 %v75
    %87 = vmatpush1.bf16.msra.mxu0 %v74
    %88 = vmatprep.subr.bf16.mxu0 %v77
    %89 = vmatpush1.bf16.msra.mxu0 %v76
    %90 = vmatprep.subr.bf16.mxu0 0
    %91 = vmatpush1.bf16.msra.mxu0 0
    %92 = vmatprep.subr.bf16.mxu0 0
    %93 = vmatpush1.bf16.msra.mxu0 0
    %94 = vmatprep.subr.bf16.mxu0 0
    %95 = vmatpush1.bf16.msra.mxu0 0
    %96 = vmatprep.subr.bf16.mxu0 0
    %97 = vmatpush1.bf16.msra.mxu0 0
    %98 = vmatprep.subr.bf16.mxu0 0
    %99 = vmatpush1.bf16.msra.mxu0 0
    %100 = vmatprep.subr.bf16.mxu0 0
    %101 = vmatpush1.bf16.msra.mxu0 0
    %102 = vmatprep.subr.bf16.mxu0 0
    %103 = vmatpush1.bf16.msra.mxu0 0
    %104 = vmatprep.subr.bf16.mxu0 0
    %105 = vmatpush1.bf16.msra.mxu0 0
    %106 = vmatprep.subr.bf16.mxu0 0
    %107 = vmatpush1.bf16.msra.mxu0 0
    %108 = vmatprep.subr.bf16.mxu0 0
    %109 = vmatpush1.bf16.msra.mxu0 0
    %110 = vmatprep.subr.bf16.mxu0 0
    %111 = vmatpush1.bf16.msra.mxu0 0
    %112 = vmatprep.subr.bf16.mxu0 0
    %113 = vmatpush1.bf16.msra.mxu0 0
    %114 = vmatprep.subr.bf16.mxu0 0
    %115 = vmatpush1.bf16.msra.mxu0 0
    %116 = vmatprep.subr.bf16.mxu0 0
    %117 = vmatpush1.bf16.msra.mxu0 0
    %118 = vmatprep.mubr.bf16.mxu0 0
    %119 = vmatmul.mubr.bf16.gmra.mrb[0].mxu0 %v84
    %v120 = vpop.f32.mrb[0].mxu0
    %v121 = vadd.f32 %v57, %v120
    %v122 = vpop.f32.mrb[0].mxu0
    %v123 = vadd.f32 %v61, %v122
    %v124 = vpop.f32.mrb[0].mxu0
    %v125 = vadd.f32 %v57, %v124
    %v126 = vpop.f32.mrb[0].mxu0
    %v127 = vadd.f32 %v61, %v126
    %128 = vdwg.mxu0
    %v129 = vpack.c.bf16 %v121, %v121
    %v130 = vpack.c.bf16 %v125, %v125
    %v131 = vpack.c.bf16 %v123, %v123
    %v132 = vpack.c.bf16 %v127, %v127
    %134 = vrot.lane.b32.xlu0 %v129, 64
    %v135 = vpop.permute.xlu0 %134
    %vm136 = vcmask 130048
    %v138 = vsel %vm136, %v129, 0
    %v141 = vsel %vm136, %v135, 0
    %143 = vmatprep.subr.bf16.mxu0 0
    %144 = vmatpush1.bf16.xpose.msra.mxu0 %v141
    %145 = vmatprep.subr.bf16.mxu0 0
    %146 = vmatpush1.bf16.xpose.msra.mxu0 0
    %147 = vmatprep.subr.bf16.mxu0 0
    %148 = vmatpush1.bf16.xpose.msra.mxu0 0
    %149 = vmatprep.subr.bf16.mxu0 0
    %150 = vmatpush1.bf16.xpose.msra.mxu0 0
    %151 = vmatprep.subr.bf16.mxu0 0
    %152 = vmatpush1.bf16.xpose.msra.mxu0 0
    %153 = vmatprep.subr.bf16.mxu0 0
    %154 = vmatpush1.bf16.xpose.msra.mxu0 0
    %155 = vmatprep.subr.bf16.mxu0 0
    %156 = vmatpush1.bf16.xpose.msra.mxu0 0
    %157 = vmatprep.subr.bf16.mxu0 0
    %158 = vmatpush1.bf16.xpose.msra.mxu0 0
    %159 = vmatprep.subr.bf16.mxu0 0
    %160 = vmatpush1.bf16.xpose.msra.mxu0 0
    %161 = vmatprep.subr.bf16.mxu0 0
    %162 = vmatpush1.bf16.xpose.msra.mxu0 0
    %163 = vmatprep.subr.bf16.mxu0 0
    %164 = vmatpush1.bf16.xpose.msra.mxu0 0
    %165 = vmatprep.subr.bf16.mxu0 0
    %166 = vmatpush1.bf16.xpose.msra.mxu0 0
    %167 = vmatprep.subr.bf16.mxu0 0
    %168 = vmatpush1.bf16.xpose.msra.mxu0 0
    %169 = vmatprep.subr.bf16.mxu0 0
    %170 = vmatpush1.bf16.xpose.msra.mxu0 0
    %171 = vmatprep.subr.bf16.mxu0 0
    %172 = vmatpush1.bf16.xpose.msra.mxu0 0
    %173 = vmatprep.subr.bf16.mxu0 0
    %174 = vmatpush1.bf16.xpose.msra.mxu0 0
    %175 = vmatprep.mubr.bf16.mxu0 0
    %176 = vmatmul.mubr.bf16.gmra.mrb[0].mxu0 %v138
    %v177 = vpop.f32.mrb[0].mxu0
    %v178 = vadd.f32 0.0, %v177
    %v179 = vpop.f32.mrb[0].mxu0
    %v180 = vpop.f32.mrb[0].mxu0
    %v181 = vpop.f32.mrb[0].mxu0
    %182 = vdwg.mxu0
    %184 = vrot.lane.b32.xlu0 %v130, 64
    %v185 = vpop.permute.xlu0 %184
    %v187 = vsel %vm136, %v130, 0
    %v190 = vsel %vm136, %v185, 0
    %192 = vmatprep.subr.bf16.mxu0 0
    %193 = vmatpush1.bf16.xpose.msra.mxu0 %v190
    %194 = vmatprep.subr.bf16.mxu0 0
    %195 = vmatpush1.bf16.xpose.msra.mxu0 0
    %196 = vmatprep.subr.bf16.mxu0 0
    %197 = vmatpush1.bf16.xpose.msra.mxu0 0
    %198 = vmatprep.subr.bf16.mxu0 0
    %199 = vmatpush1.bf16.xpose.msra.mxu0 0
    %200 = vmatprep.subr.bf16.mxu0 0
    %201 = vmatpush1.bf16.xpose.msra.mxu0 0
    %202 = vmatprep.subr.bf16.mxu0 0
    %203 = vmatpush1.bf16.xpose.msra.mxu0 0
    %204 = vmatprep.subr.bf16.mxu0 0
    %205 = vmatpush1.bf16.xpose.msra.mxu0 0
    %206 = vmatprep.subr.bf16.mxu0 0
    %207 = vmatpush1.bf16.xpose.msra.mxu0 0
    %208 = vmatprep.subr.bf16.mxu0 0
    %209 = vmatpush1.bf16.xpose.msra.mxu0 0
    %210 = vmatprep.subr.bf16.mxu0 0
    %211 = vmatpush1.bf16.xpose.msra.mxu0 0
    %212 = vmatprep.subr.bf16.mxu0 0
    %213 = vmatpush1.bf16.xpose.msra.mxu0 0
    %214 = vmatprep.subr.bf16.mxu0 0
    %215 = vmatpush1.bf16.xpose.msra.mxu0 0
    %216 = vmatprep.subr.bf16.mxu0 0
    %217 = vmatpush1.bf16.xpose.msra.mxu0 0
    %218 = vmatprep.subr.bf16.mxu0 0
    %219 = vmatpush1.bf16.xpose.msra.mxu0 0
    %220 = vmatprep.subr.bf16.mxu0 0
    %221 = vmatpush1.bf16.xpose.msra.mxu0 0
    %222 = vmatprep.subr.bf16.mxu0 0
    %223 = vmatpush1.bf16.xpose.msra.mxu0 0
    %224 = vmatprep.mubr.bf16.mxu0 0
    %225 = vmatmul.mubr.bf16.gmra.mrb[0].mxu0 %v187
    %v226 = vpop.f32.mrb[0].mxu0
    %v227 = vadd.f32 0.0, %v226
    %v228 = vpop.f32.mrb[0].mxu0
    %v229 = vpop.f32.mrb[0].mxu0
    %v230 = vpop.f32.mrb[0].mxu0
    %231 = vdwg.mxu0
    %v232 = vmul.f32 %v178, 0.25
    %v233 = vmul.f32 %v227, 0.25
    %vm234 = vcmask 64512
    %v235 = vsel %vm234, %v232, -inf
    %236 = vmax.xlane.f32.xlu0 %v235
    %v237 = vpop.xlane.xlu0 %236
    %v238 = vsel %vm234, %v233, -inf
    %239 = vmax.xlane.f32.xlu0 %v238
    %v240 = vpop.xlane.xlu0 %239
    %v241 = vsub.f32 %v232, %v237
    %v242 = vsub.f32 %v233, %v240
    %v243 = vmul.f32 %v241, 1.442695
    %v244 = vpow.pop %v243
    %v245 = vmul.f32 %v242, 1.442695
    %v246 = vpow.pop %v245
    %v247 = vsel %vm234, %v244, 0.0
    %248 = vadd.xlane.f32.xlu0 %v247
    %v249 = vpop.xlane.xlu0 %248
    %v250 = vsel %vm234, %v246, 0.0
    %251 = vadd.xlane.f32.xlu0 %v250
    %v252 = vpop.xlane.xlu0 %251
    %v253 = vrcp.pop %v249
    %v254 = vmul.f32 %v244, %v253
    %v255 = vrcp.pop %v252
    %v256 = vmul.f32 %v246, %v255
    %v257 = vpack.c.bf16 %v254, %v254
    %v258 = vpack.c.bf16 %v256, %v256
    %v260 = vsel %vm234, %v257, 0
    %vm262 = vcmask 1043456
    %v264 = vsel %vm262, %v131, 0
    %266 = vmatprep.subr.bf16.mxu0 0
    %267 = vmatpush1.bf16.msra.mxu0 %v264
    %268 = vmatprep.subr.bf16.mxu0 0
    %269 = vmatpush1.bf16.msra.mxu0 0
    %270 = vmatprep.subr.bf16.mxu0 0
    %271 = vmatpush1.bf16.msra.mxu0 0
    %272 = vmatprep.subr.bf16.mxu0 0
    %273 = vmatpush1.bf16.msra.mxu0 0
    %274 = vmatprep.subr.bf16.mxu0 0
    %275 = vmatpush1.bf16.msra.mxu0 0
    %276 = vmatprep.subr.bf16.mxu0 0
    %277 = vmatpush1.bf16.msra.mxu0 0
    %278 = vmatprep.subr.bf16.mxu0 0
    %279 = vmatpush1.bf16.msra.mxu0 0
    %280 = vmatprep.subr.bf16.mxu0 0
    %281 = vmatpush1.bf16.msra.mxu0 0
    %282 = vmatprep.subr.bf16.mxu0 0
    %283 = vmatpush1.bf16.msra.mxu0 0
    %284 = vmatprep.subr.bf16.mxu0 0
    %285 = vmatpush1.bf16.msra.mxu0 0
    %286 = vmatprep.subr.bf16.mxu0 0
    %287 = vmatpush1.bf16.msra.mxu0 0
    %288 = vmatprep.subr.bf16.mxu0 0
    %289 = vmatpush1.bf16.msra.mxu0 0
    %290 = vmatprep.subr.bf16.mxu0 0
    %291 = vmatpush1.bf16.msra.mxu0 0
    %292 = vmatprep.subr.bf16.mxu0 0
    %293 = vmatpush1.bf16.msra.mxu0 0
    %294 = vmatprep.subr.bf16.mxu0 0
    %295 = vmatpush1.bf16.msra.mxu0 0
    %296 = vmatprep.subr.bf16.mxu0 0
    %297 = vmatpush1.bf16.msra.mxu0 0
    %298 = vmatprep.mubr.bf16.mxu0 0
    %299 = vmatmul.mubr.bf16.gmra.mrb[0].mxu0 %v260
    %v300 = vpop.f32.mrb[0].mxu0
    %v301 = vadd.f32 0.0, %v300
    %v302 = vpop.f32.mrb[0].mxu0
    %v303 = vpop.f32.mrb[0].mxu0
    %v304 = vpop.f32.mrb[0].mxu0
    %305 = vdwg.mxu0
    %v307 = vsel %vm234, %v258, 0
    %v310 = vsel %vm262, %v132, 0
    %312 = vmatprep.subr.bf16.mxu0 0
    %313 = vmatpush1.bf16.msra.mxu0 %v310
    %314 = vmatprep.subr.bf16.mxu0 0
    %315 = vmatpush1.bf16.msra.mxu0 0
    %316 = vmatprep.subr.bf16.mxu0 0
    %317 = vmatpush1.bf16.msra.mxu0 0
    %318 = vmatprep.subr.bf16.mxu0 0
    %319 = vmatpush1.bf16.msra.mxu0 0
    %320 = vmatprep.subr.bf16.mxu0 0
    %321 = vmatpush1.bf16.msra.mxu0 0
    %322 = vmatprep.subr.bf16.mxu0 0
    %323 = vmatpush1.bf16.msra.mxu0 0
    %324 = vmatprep.subr.bf16.mxu0 0
    %325 = vmatpush1.bf16.msra.mxu0 0
    %326 = vmatprep.subr.bf16.mxu0 0
    %327 = vmatpush1.bf16.msra.mxu0 0
    %328 = vmatprep.subr.bf16.mxu0 0
    %329 = vmatpush1.bf16.msra.mxu0 0
    %330 = vmatprep.subr.bf16.mxu0 0
    %331 = vmatpush1.bf16.msra.mxu0 0
    %332 = vmatprep.subr.bf16.mxu0 0
    %333 = vmatpush1.bf16.msra.mxu0 0
    %334 = vmatprep.subr.bf16.mxu0 0
    %335 = vmatpush1.bf16.msra.mxu0 0
    %336 = vmatprep.subr.bf16.mxu0 0
    %337 = vmatpush1.bf16.msra.mxu0 0
    %338 = vmatprep.subr.bf16.mxu0 0
    %339 = vmatpush1.bf16.msra.mxu0 0
    %340 = vmatprep.subr.bf16.mxu0 0
    %341 = vmatpush1.bf16.msra.mxu0 0
    %342 = vmatprep.subr.bf16.mxu0 0
    %343 = vmatpush1.bf16.msra.mxu0 0
    %344 = vmatprep.mubr.bf16.mxu0 0
    %345 = vmatmul.mubr.bf16.gmra.mrb[0].mxu0 %v307
    %v346 = vpop.f32.mrb[0].mxu0
    %v347 = vadd.f32 0.0, %v346
    %v348 = vpop.f32.mrb[0].mxu0
    %v349 = vpop.f32.mrb[0].mxu0
    %v350 = vpop.f32.mrb[0].mxu0
    %351 = vdwg.mxu0
    %v352 = vpack.c.bf16 %v347, %v301
    %353 = vrot.lane.b32.xlu0 %v129, 112
    %v354 = vpop.permute.xlu0 %353
    %355 = vrot.lane.b32.xlu0 %v129, 48
    %v356 = vpop.permute.xlu0 %355
    %v358 = vsel %vm136, %v354, 0
    %v361 = vsel %vm136, %v356, 0
    %363 = vmatprep.subr.bf16.mxu0 0
    %364 = vmatpush1.bf16.xpose.msra.mxu0 %v361
    %365 = vmatprep.subr.bf16.mxu0 0
    %366 = vmatpush1.bf16.xpose.msra.mxu0 0
    %367 = vmatprep.subr.bf16.mxu0 0
    %368 = vmatpush1.bf16.xpose.msra.mxu0 0
    %369 = vmatprep.subr.bf16.mxu0 0
    %370 = vmatpush1.bf16.xpose.msra.mxu0 0
    %371 = vmatprep.subr.bf16.mxu0 0
    %372 = vmatpush1.bf16.xpose.msra.mxu0 0
    %373 = vmatprep.subr.bf16.mxu0 0
    %374 = vmatpush1.bf16.xpose.msra.mxu0 0
    %375 = vmatprep.subr.bf16.mxu0 0
    %376 = vmatpush1.bf16.xpose.msra.mxu0 0
    %377 = vmatprep.subr.bf16.mxu0 0
    %378 = vmatpush1.bf16.xpose.msra.mxu0 0
    %379 = vmatprep.subr.bf16.mxu0 0
    %380 = vmatpush1.bf16.xpose.msra.mxu0 0
    %381 = vmatprep.subr.bf16.mxu0 0
    %382 = vmatpush1.bf16.xpose.msra.mxu0 0
    %383 = vmatprep.subr.bf16.mxu0 0
    %384 = vmatpush1.bf16.xpose.msra.mxu0 0
    %385 = vmatprep.subr.bf16.mxu0 0
    %386 = vmatpush1.bf16.xpose.msra.mxu0 0
    %387 = vmatprep.subr.bf16.mxu0 0
    %388 = vmatpush1.bf16.xpose.msra.mxu0 0
    %389 = vmatprep.subr.bf16.mxu0 0
    %390 = vmatpush1.bf16.xpose.msra.mxu0 0
    %391 = vmatprep.subr.bf16.mxu0 0
    %392 = vmatpush1.bf16.xpose.msra.mxu0 0
    %393 = vmatprep.subr.bf16.mxu0 0
    %394 = vmatpush1.bf16.xpose.msra.mxu0 0
    %395 = vmatprep.mubr.bf16.mxu0 0
    %396 = vmatmul.mubr.bf16.gmra.mrb[0].mxu0 %v358
    %v397 = vpop.f32.mrb[0].mxu0
    %v398 = vadd.f32 0.0, %v397
    %v399 = vpop.f32.mrb[0].mxu0
    %v400 = vpop.f32.mrb[0].mxu0
    %v401 = vpop.f32.mrb[0].mxu0
    %402 = vdwg.mxu0
    %403 = vrot.lane.b32.xlu0 %v130, 112
    %v404 = vpop.permute.xlu0 %403
    %405 = vrot.lane.b32.xlu0 %v130, 48
    %v406 = vpop.permute.xlu0 %405
    %v408 = vsel %vm136, %v404, 0
    %v411 = vsel %vm136, %v406, 0
    %413 = vmatprep.subr.bf16.mxu0 0
    %414 = vmatpush1.bf16.xpose.msra.mxu0 %v411
    %415 = vmatprep.subr.bf16.mxu0 0
    %416 = vmatpush1.bf16.xpose.msra.mxu0 0
    %417 = vmatprep.subr.bf16.mxu0 0
    %418 = vmatpush1.bf16.xpose.msra.mxu0 0
    %419 = vmatprep.subr.bf16.mxu0 0
    %420 = vmatpush1.bf16.xpose.msra.mxu0 0
    %421 = vmatprep.subr.bf16.mxu0 0
    %422 = vmatpush1.bf16.xpose.msra.mxu0 0
    %423 = vmatprep.subr.bf16.mxu0 0
    %424 = vmatpush1.bf16.xpose.msra.mxu0 0
    %425 = vmatprep.subr.bf16.mxu0 0
    %426 = vmatpush1.bf16.xpose.msra.mxu0 0
    %427 = vmatprep.subr.bf16.mxu0 0
    %428 = vmatpush1.bf16.xpose.msra.mxu0 0
    %429 = vmatprep.subr.bf16.mxu0 0
    %430 = vmatpush1.bf16.xpose.msra.mxu0 0
    %431 = vmatprep.subr.bf16.mxu0 0
    %432 = vmatpush1.bf16.xpose.msra.mxu0 0
    %433 = vmatprep.subr.bf16.mxu0 0
    %434 = vmatpush1.bf16.xpose.msra.mxu0 0
    %435 = vmatprep.subr.bf16.mxu0 0
    %436 = vmatpush1.bf16.xpose.msra.mxu0 0
    %437 = vmatprep.subr.bf16.mxu0 0
    %438 = vmatpush1.bf16.xpose.msra.mxu0 0
    %439 = vmatprep.subr.bf16.mxu0 0
    %440 = vmatpush1.bf16.xpose.msra.mxu0 0
    %441 = vmatprep.subr.bf16.mxu0 0
    %442 = vmatpush1.bf16.xpose.msra.mxu0 0
    %443 = vmatprep.subr.bf16.mxu0 0
    %444 = vmatpush1.bf16.xpose.msra.mxu0 0
    %445 = vmatprep.mubr.bf16.mxu0 0
    %446 = vmatmul.mubr.bf16.gmra.mrb[0].mxu0 %v408
    %v447 = vpop.f32.mrb[0].mxu0
    %v448 = vadd.f32 0.0, %v447
    %v449 = vpop.f32.mrb[0].mxu0
    %v450 = vpop.f32.mrb[0].mxu0
    %v451 = vpop.f32.mrb[0].mxu0
    %452 = vdwg.mxu0
    %v453 = vmul.f32 %v398, 0.25
    %v454 = vmul.f32 %v448, 0.25
    %v455 = vsel %vm234, %v453, -inf
    %456 = vmax.xlane.f32.xlu0 %v455
    %v457 = vpop.xlane.xlu0 %456
    %v458 = vsel %vm234, %v454, -inf
    %459 = vmax.xlane.f32.xlu0 %v458
    %v460 = vpop.xlane.xlu0 %459
    %v461 = vsub.f32 %v453, %v457
    %v462 = vsub.f32 %v454, %v460
    %v463 = vmul.f32 %v461, 1.442695
    %v464 = vpow.pop %v463
    %v465 = vmul.f32 %v462, 1.442695
    %v466 = vpow.pop %v465
    %v467 = vsel %vm234, %v464, 0.0
    %468 = vadd.xlane.f32.xlu0 %v467
    %v469 = vpop.xlane.xlu0 %468
    %v470 = vsel %vm234, %v466, 0.0
    %471 = vadd.xlane.f32.xlu0 %v470
    %v472 = vpop.xlane.xlu0 %471
    %v473 = vrcp.pop %v469
    %v474 = vmul.f32 %v464, %v473
    %v475 = vrcp.pop %v472
    %v476 = vmul.f32 %v466, %v475
    %v477 = vpack.c.bf16 %v474, %v474
    %v478 = vpack.c.bf16 %v476, %v476
    %480 = vrot.lane.b32.xlu0 %v131, 112
    %v481 = vpop.permute.xlu0 %480
    %v483 = vsel %vm234, %v477, 0
    %v486 = vsel %vm262, %v481, 0
    %488 = vmatprep.subr.bf16.mxu0 0
    %489 = vmatpush1.bf16.msra.mxu0 %v486
    %490 = vmatprep.subr.bf16.mxu0 0
    %491 = vmatpush1.bf16.msra.mxu0 0
    %492 = vmatprep.subr.bf16.mxu0 0
    %493 = vmatpush1.bf16.msra.mxu0 0
    %494 = vmatprep.subr.bf16.mxu0 0
    %495 = vmatpush1.bf16.msra.mxu0 0
    %496 = vmatprep.subr.bf16.mxu0 0
    %497 = vmatpush1.bf16.msra.mxu0 0
    %498 = vmatprep.subr.bf16.mxu0 0
    %499 = vmatpush1.bf16.msra.mxu0 0
    %500 = vmatprep.subr.bf16.mxu0 0
    %501 = vmatpush1.bf16.msra.mxu0 0
    %502 = vmatprep.subr.bf16.mxu0 0
    %503 = vmatpush1.bf16.msra.mxu0 0
    %504 = vmatprep.subr.bf16.mxu0 0
    %505 = vmatpush1.bf16.msra.mxu0 0
    %506 = vmatprep.subr.bf16.mxu0 0
    %507 = vmatpush1.bf16.msra.mxu0 0
    %508 = vmatprep.subr.bf16.mxu0 0
    %509 = vmatpush1.bf16.msra.mxu0 0
    %510 = vmatprep.subr.bf16.mxu0 0
    %511 = vmatpush1.bf16.msra.mxu0 0
    %512 = vmatprep.subr.bf16.mxu0 0
    %513 = vmatpush1.bf16.msra.mxu0 0
    %514 = vmatprep.subr.bf16.mxu0 0
    %515 = vmatpush1.bf16.msra.mxu0 0
    %516 = vmatprep.subr.bf16.mxu0 0
    %517 = vmatpush1.bf16.msra.mxu0 0
    %518 = vmatprep.subr.bf16.mxu0 0
    %519 = vmatpush1.bf16.msra.mxu0 0
    %520 = vmatprep.mubr.bf16.mxu0 0
    %521 = vmatmul.mubr.bf16.gmra.mrb[0].mxu0 %v483
    %v522 = vpop.f32.mrb[0].mxu0
    %v523 = vadd.f32 0.0, %v522
    %v524 = vpop.f32.mrb[0].mxu0
    %v525 = vpop.f32.mrb[0].mxu0
    %v526 = vpop.f32.mrb[0].mxu0
    %527 = vdwg.mxu0
    %529 = vrot.lane.b32.xlu0 %v132, 112
    %v530 = vpop.permute.xlu0 %529
    %v532 = vsel %vm234, %v478, 0
    %v535 = vsel %vm262, %v530, 0
    %537 = vmatprep.subr.bf16.mxu0 0
    %538 = vmatpush1.bf16.msra.mxu0 %v535
    %539 = vmatprep.subr.bf16.mxu0 0
    %540 = vmatpush1.bf16.msra.mxu0 0
    %541 = vmatprep.subr.bf16.mxu0 0
    %542 = vmatpush1.bf16.msra.mxu0 0
    %543 = vmatprep.subr.bf16.mxu0 0
    %544 = vmatpush1.bf16.msra.mxu0 0
    %545 = vmatprep.subr.bf16.mxu0 0
    %546 = vmatpush1.bf16.msra.mxu0 0
    %547 = vmatprep.subr.bf16.mxu0 0
    %548 = vmatpush1.bf16.msra.mxu0 0
    %549 = vmatprep.subr.bf16.mxu0 0
    %550 = vmatpush1.bf16.msra.mxu0 0
    %551 = vmatprep.subr.bf16.mxu0 0
    %552 = vmatpush1.bf16.msra.mxu0 0
    %553 = vmatprep.subr.bf16.mxu0 0
    %554 = vmatpush1.bf16.msra.mxu0 0
    %555 = vmatprep.subr.bf16.mxu0 0
    %556 = vmatpush1.bf16.msra.mxu0 0
    %557 = vmatprep.subr.bf16.mxu0 0
    %558 = vmatpush1.bf16.msra.mxu0 0
    %559 = vmatprep.subr.bf16.mxu0 0
    %560 = vmatpush1.bf16.msra.mxu0 0
    %561 = vmatprep.subr.bf16.mxu0 0
    %562 = vmatpush1.bf16.msra.mxu0 0
    %563 = vmatprep.subr.bf16.mxu0 0
    %564 = vmatpush1.bf16.msra.mxu0 0
    %565 = vmatprep.subr.bf16.mxu0 0
    %566 = vmatpush1.bf16.msra.mxu0 0
    %567 = vmatprep.subr.bf16.mxu0 0
    %568 = vmatpush1.bf16.msra.mxu0 0
    %569 = vmatprep.mubr.bf16.mxu0 0
    %570 = vmatmul.mubr.bf16.gmra.mrb[0].mxu0 %v532
    %v571 = vpop.f32.mrb[0].mxu0
    %v572 = vadd.f32 0.0, %v571
    %v573 = vpop.f32.mrb[0].mxu0
    %v574 = vpop.f32.mrb[0].mxu0
    %v575 = vpop.f32.mrb[0].mxu0
    %576 = vdwg.mxu0
    %v577 = vpack.c.bf16 %v572, %v523
    %v580 = vunpack.c.l.b16 %v33
    %v581 = vunpack.c.l.b16 %v34
    %v582 = vpack.c.b16 %v581, %v580
    %v585 = vsel %vm136, %v577, 0
    %587 = vmatprep.subr.bf16.mxu0 0
    %588 = vmatpush1.bf16.msra.mxu0 %v582
    %589 = vmatprep.subr.bf16.mxu0 0
    %590 = vmatpush1.bf16.msra.mxu0 0
    %591 = vmatprep.subr.bf16.mxu0 0
    %592 = vmatpush1.bf16.msra.mxu0 0
    %593 = vmatprep.subr.bf16.mxu0 0
    %594 = vmatpush1.bf16.msra.mxu0 0
    %595 = vmatprep.subr.bf16.mxu0 0
    %596 = vmatpush1.bf16.msra.mxu0 0
    %597 = vmatprep.subr.bf16.mxu0 0
    %598 = vmatpush1.bf16.msra.mxu0 0
    %599 = vmatprep.subr.bf16.mxu0 0
    %600 = vmatpush1.bf16.msra.mxu0 0
    %601 = vmatprep.subr.bf16.mxu0 0
    %602 = vmatpush1.bf16.msra.mxu0 0
    %603 = vmatprep.subr.bf16.mxu0 0
    %604 = vmatpush1.bf16.msra.mxu0 0
    %605 = vmatprep.subr.bf16.mxu0 0
    %606 = vmatpush1.bf16.msra.mxu0 0
    %607 = vmatprep.subr.bf16.mxu0 0
    %608 = vmatpush1.bf16.msra.mxu0 0
    %609 = vmatprep.subr.bf16.mxu0 0
    %610 = vmatpush1.bf16.msra.mxu0 0
    %611 = vmatprep.subr.bf16.mxu0 0
    %612 = vmatpush1.bf16.msra.mxu0 0
    %613 = vmatprep.subr.bf16.mxu0 0
    %614 = vmatpush1.bf16.msra.mxu0 0
    %615 = vmatprep.subr.bf16.mxu0 0
    %616 = vmatpush1.bf16.msra.mxu0 0
    %617 = vmatprep.subr.bf16.mxu0 0
    %618 = vmatpush1.bf16.msra.mxu0 0
    %619 = vmatprep.mubr.bf16.mxu0 0
    %620 = vmatmul.mubr.bf16.gmra.mrb[0].mxu0 %v585
    %v621 = vpop.f32.mrb[0].mxu0
    %v622 = vadd.f32 0.0, %v621
    %v623 = vpop.f32.mrb[0].mxu0
    %v624 = vpop.f32.mrb[0].mxu0
    %v625 = vadd.f32 0.0, %v624
    %v626 = vpop.f32.mrb[0].mxu0
    %627 = vdwg.mxu0
    %v630 = vunpack.c.l.b16 %v31
    %v631 = vunpack.c.l.b16 %v32
    %v632 = vpack.c.b16 %v631, %v630
    %v635 = vsel %vm136, %v352, 0
    %637 = vmatprep.subr.bf16.mxu0 0
    %638 = vmatpush1.bf16.msra.mxu0 %v632
    %639 = vmatprep.subr.bf16.mxu0 0
    %640 = vmatpush1.bf16.msra.mxu0 0
    %641 = vmatprep.subr.bf16.mxu0 0
    %642 = vmatpush1.bf16.msra.mxu0 0
    %643 = vmatprep.subr.bf16.mxu0 0
    %644 = vmatpush1.bf16.msra.mxu0 0
    %645 = vmatprep.subr.bf16.mxu0 0
    %646 = vmatpush1.bf16.msra.mxu0 0
    %647 = vmatprep.subr.bf16.mxu0 0
    %648 = vmatpush1.bf16.msra.mxu0 0
    %649 = vmatprep.subr.bf16.mxu0 0
    %650 = vmatpush1.bf16.msra.mxu0 0
    %651 = vmatprep.subr.bf16.mxu0 0
    %652 = vmatpush1.bf16.msra.mxu0 0
    %653 = vmatprep.subr.bf16.mxu0 0
    %654 = vmatpush1.bf16.msra.mxu0 0
    %655 = vmatprep.subr.bf16.mxu0 0
    %656 = vmatpush1.bf16.msra.mxu0 0
    %657 = vmatprep.subr.bf16.mxu0 0
    %658 = vmatpush1.bf16.msra.mxu0 0
    %659 = vmatprep.subr.bf16.mxu0 0
    %660 = vmatpush1.bf16.msra.mxu0 0
    %661 = vmatprep.subr.bf16.mxu0 0
    %662 = vmatpush1.bf16.msra.mxu0 0
    %663 = vmatprep.subr.bf16.mxu0 0
    %664 = vmatpush1.bf16.msra.mxu0 0
    %665 = vmatprep.subr.bf16.mxu0 0
    %666 = vmatpush1.bf16.msra.mxu0 0
    %667 = vmatprep.subr.bf16.mxu0 0
    %668 = vmatpush1.bf16.msra.mxu0 0
    %669 = vmatprep.mubr.bf16.mxu0 0
    %670 = vmatmul.mubr.bf16.gmra.mrb[0].mxu0 %v635
    %v671 = vpop.f32.mrb[0].mxu0
    %v672 = vadd.f32 %v622, %v671
    %v673 = vpop.f32.mrb[0].mxu0
    %v674 = vpop.f32.mrb[0].mxu0
    %v675 = vadd.f32 %v625, %v674
    %v676 = vpop.f32.mrb[0].mxu0
    %677 = vdwg.mxu0
    %678 = vrot.lane.b32.xlu0 %v129, 96
    %v679 = vpop.permute.xlu0 %678
    %680 = vrot.lane.b32.xlu0 %v129, 32
    %v681 = vpop.permute.xlu0 %680
    %v683 = vsel %vm136, %v679, 0
    %v686 = vsel %vm136, %v681, 0
    %688 = vmatprep.subr.bf16.mxu0 0
    %689 = vmatpush1.bf16.xpose.msra.mxu0 %v686
    %690 = vmatprep.subr.bf16.mxu0 0
    %691 = vmatpush1.bf16.xpose.msra.mxu0 0
    %692 = vmatprep.subr.bf16.mxu0 0
    %693 = vmatpush1.bf16.xpose.msra.mxu0 0
    %694 = vmatprep.subr.bf16.mxu0 0
    %695 = vmatpush1.bf16.xpose.msra.mxu0 0
    %696 = vmatprep.subr.bf16.mxu0 0
    %697 = vmatpush1.bf16.xpose.msra.mxu0 0
    %698 = vmatprep.subr.bf16.mxu0 0
    %699 = vmatpush1.bf16.xpose.msra.mxu0 0
    %700 = vmatprep.subr.bf16.mxu0 0
    %701 = vmatpush1.bf16.xpose.msra.mxu0 0
    %702 = vmatprep.subr.bf16.mxu0 0
    %703 = vmatpush1.bf16.xpose.msra.mxu0 0
    %704 = vmatprep.subr.bf16.mxu0 0
    %705 = vmatpush1.bf16.xpose.msra.mxu0 0
    %706 = vmatprep.subr.bf16.mxu0 0
    %707 = vmatpush1.bf16.xpose.msra.mxu0 0
    %708 = vmatprep.subr.bf16.mxu0 0
    %709 = vmatpush1.bf16.xpose.msra.mxu0 0
    %710 = vmatprep.subr.bf16.mxu0 0
    %711 = vmatpush1.bf16.xpose.msra.mxu0 0
    %712 = vmatprep.subr.bf16.mxu0 0
    %713 = vmatpush1.bf16.xpose.msra.mxu0 0
    %714 = vmatprep.subr.bf16.mxu0 0
    %715 = vmatpush1.bf16.xpose.msra.mxu0 0
    %716 = vmatprep.subr.bf16.mxu0 0
    %717 = vmatpush1.bf16.xpose.msra.mxu0 0
    %718 = vmatprep.subr.bf16.mxu0 0
    %719 = vmatpush1.bf16.xpose.msra.mxu0 0
    %720 = vmatprep.mubr.bf16.mxu0 0
    %721 = vmatmul.mubr.bf16.gmra.mrb[0].mxu0 %v683
    %v722 = vpop.f32.mrb[0].mxu0
    %v723 = vadd.f32 0.0, %v722
    %v724 = vpop.f32.mrb[0].mxu0
    %v725 = vpop.f32.mrb[0].mxu0
    %v726 = vpop.f32.mrb[0].mxu0
    %727 = vdwg.mxu0
    %728 = vrot.lane.b32.xlu0 %v130, 96
    %v729 = vpop.permute.xlu0 %728
    %730 = vrot.lane.b32.xlu0 %v130, 32
    %v731 = vpop.permute.xlu0 %730
    %v733 = vsel %vm136, %v729, 0
    %v736 = vsel %vm136, %v731, 0
    %738 = vmatprep.subr.bf16.mxu0 0
    %739 = vmatpush1.bf16.xpose.msra.mxu0 %v736
    %740 = vmatprep.subr.bf16.mxu0 0
    %741 = vmatpush1.bf16.xpose.msra.mxu0 0
    %742 = vmatprep.subr.bf16.mxu0 0
    %743 = vmatpush1.bf16.xpose.msra.mxu0 0
    %744 = vmatprep.subr.bf16.mxu0 0
    %745 = vmatpush1.bf16.xpose.msra.mxu0 0
    %746 = vmatprep.subr.bf16.mxu0 0
    %747 = vmatpush1.bf16.xpose.msra.mxu0 0
    %748 = vmatprep.subr.bf16.mxu0 0
    %749 = vmatpush1.bf16.xpose.msra.mxu0 0
    %750 = vmatprep.subr.bf16.mxu0 0
    %751 = vmatpush1.bf16.xpose.msra.mxu0 0
    %752 = vmatprep.subr.bf16.mxu0 0
    %753 = vmatpush1.bf16.xpose.msra.mxu0 0
    %754 = vmatprep.subr.bf16.mxu0 0
    %755 = vmatpush1.bf16.xpose.msra.mxu0 0
    %756 = vmatprep.subr.bf16.mxu0 0
    %757 = vmatpush1.bf16.xpose.msra.mxu0 0
    %758 = vmatprep.subr.bf16.mxu0 0
    %759 = vmatpush1.bf16.xpose.msra.mxu0 0
    %760 = vmatprep.subr.bf16.mxu0 0
    %761 = vmatpush1.bf16.xpose.msra.mxu0 0
    %762 = vmatprep.subr.bf16.mxu0 0
    %763 = vmatpush1.bf16.xpose.msra.mxu0 0
    %764 = vmatprep.subr.bf16.mxu0 0
    %765 = vmatpush1.bf16.xpose.msra.mxu0 0
    %766 = vmatprep.subr.bf16.mxu0 0
    %767 = vmatpush1.bf16.xpose.msra.mxu0 0
    %768 = vmatprep.subr.bf16.mxu0 0
    %769 = vmatpush1.bf16.xpose.msra.mxu0 0
    %770 = vmatprep.mubr.bf16.mxu0 0
    %771 = vmatmul.mubr.bf16.gmra.mrb[0].mxu0 %v733
    %v772 = vpop.f32.mrb[0].mxu0
    %v773 = vadd.f32 0.0, %v772
    %v774 = vpop.f32.mrb[0].mxu0
    %v775 = vpop.f32.mrb[0].mxu0
    %v776 = vpop.f32.mrb[0].mxu0
    %777 = vdwg.mxu0
    %v778 = vmul.f32 %v723, 0.25
    %v779 = vmul.f32 %v773, 0.25
    %v780 = vsel %vm234, %v778, -inf
    %781 = vmax.xlane.f32.xlu0 %v780
    %v782 = vpop.xlane.xlu0 %781
    %v783 = vsel %vm234, %v779, -inf
    %784 = vmax.xlane.f32.xlu0 %v783
    %v785 = vpop.xlane.xlu0 %784
    %v786 = vsub.f32 %v778, %v782
    %v787 = vsub.f32 %v779, %v785
    %v788 = vmul.f32 %v786, 1.442695
    %v789 = vpow.pop %v788
    %v790 = vmul.f32 %v787, 1.442695
    %v791 = vpow.pop %v790
    %v792 = vsel %vm234, %v789, 0.0
    %793 = vadd.xlane.f32.xlu0 %v792
    %v794 = vpop.xlane.xlu0 %793
    %v795 = vsel %vm234, %v791, 0.0
    %796 = vadd.xlane.f32.xlu0 %v795
    %v797 = vpop.xlane.xlu0 %796
    %v798 = vrcp.pop %v794
    %v799 = vmul.f32 %v789, %v798
    %v800 = vrcp.pop %v797
    %v801 = vmul.f32 %v791, %v800
    %v802 = vpack.c.bf16 %v799, %v799
    %v803 = vpack.c.bf16 %v801, %v801
    %804 = vrot.lane.b32.xlu0 %v131, 96
    %v805 = vpop.permute.xlu0 %804
    %v807 = vsel %vm234, %v802, 0
    %v810 = vsel %vm262, %v805, 0
    %812 = vmatprep.subr.bf16.mxu0 0
    %813 = vmatpush1.bf16.msra.mxu0 %v810
    %814 = vmatprep.subr.bf16.mxu0 0
    %815 = vmatpush1.bf16.msra.mxu0 0
    %816 = vmatprep.subr.bf16.mxu0 0
    %817 = vmatpush1.bf16.msra.mxu0 0
    %818 = vmatprep.subr.bf16.mxu0 0
    %819 = vmatpush1.bf16.msra.mxu0 0
    %820 = vmatprep.subr.bf16.mxu0 0
    %821 = vmatpush1.bf16.msra.mxu0 0
    %822 = vmatprep.subr.bf16.mxu0 0
    %823 = vmatpush1.bf16.msra.mxu0 0
    %824 = vmatprep.subr.bf16.mxu0 0
    %825 = vmatpush1.bf16.msra.mxu0 0
    %826 = vmatprep.subr.bf16.mxu0 0
    %827 = vmatpush1.bf16.msra.mxu0 0
    %828 = vmatprep.subr.bf16.mxu0 0
    %829 = vmatpush1.bf16.msra.mxu0 0
    %830 = vmatprep.subr.bf16.mxu0 0
    %831 = vmatpush1.bf16.msra.mxu0 0
    %832 = vmatprep.subr.bf16.mxu0 0
    %833 = vmatpush1.bf16.msra.mxu0 0
    %834 = vmatprep.subr.bf16.mxu0 0
    %835 = vmatpush1.bf16.msra.mxu0 0
    %836 = vmatprep.subr.bf16.mxu0 0
    %837 = vmatpush1.bf16.msra.mxu0 0
    %838 = vmatprep.subr.bf16.mxu0 0
    %839 = vmatpush1.bf16.msra.mxu0 0
    %840 = vmatprep.subr.bf16.mxu0 0
    %841 = vmatpush1.bf16.msra.mxu0 0
    %842 = vmatprep.subr.bf16.mxu0 0
    %843 = vmatpush1.bf16.msra.mxu0 0
    %844 = vmatprep.mubr.bf16.mxu0 0
    %845 = vmatmul.mubr.bf16.gmra.mrb[0].mxu0 %v807
    %v846 = vpop.f32.mrb[0].mxu0
    %v847 = vadd.f32 0.0, %v846
    %v848 = vpop.f32.mrb[0].mxu0
    %v849 = vpop.f32.mrb[0].mxu0
    %v850 = vpop.f32.mrb[0].mxu0
    %851 = vdwg.mxu0
    %852 = vrot.lane.b32.xlu0 %v132, 96
    %v853 = vpop.permute.xlu0 %852
    %v855 = vsel %vm234, %v803, 0
    %v858 = vsel %vm262, %v853, 0
    %860 = vmatprep.subr.bf16.mxu0 0
    %861 = vmatpush1.bf16.msra.mxu0 %v858
    %862 = vmatprep.subr.bf16.mxu0 0
    %863 = vmatpush1.bf16.msra.mxu0 0
    %864 = vmatprep.subr.bf16.mxu0 0
    %865 = vmatpush1.bf16.msra.mxu0 0
    %866 = vmatprep.subr.bf16.mxu0 0
    %867 = vmatpush1.bf16.msra.mxu0 0
    %868 = vmatprep.subr.bf16.mxu0 0
    %869 = vmatpush1.bf16.msra.mxu0 0
    %870 = vmatprep.subr.bf16.mxu0 0
    %871 = vmatpush1.bf16.msra.mxu0 0
    %872 = vmatprep.subr.bf16.mxu0 0
    %873 = vmatpush1.bf16.msra.mxu0 0
    %874 = vmatprep.subr.bf16.mxu0 0
    %875 = vmatpush1.bf16.msra.mxu0 0
    %876 = vmatprep.subr.bf16.mxu0 0
    %877 = vmatpush1.bf16.msra.mxu0 0
    %878 = vmatprep.subr.bf16.mxu0 0
    %879 = vmatpush1.bf16.msra.mxu0 0
    %880 = vmatprep.subr.bf16.mxu0 0
    %881 = vmatpush1.bf16.msra.mxu0 0
    %882 = vmatprep.subr.bf16.mxu0 0
    %883 = vmatpush1.bf16.msra.mxu0 0
    %884 = vmatprep.subr.bf16.mxu0 0
    %885 = vmatpush1.bf16.msra.mxu0 0
    %886 = vmatprep.subr.bf16.mxu0 0
    %887 = vmatpush1.bf16.msra.mxu0 0
    %888 = vmatprep.subr.bf16.mxu0 0
    %889 = vmatpush1.bf16.msra.mxu0 0
    %890 = vmatprep.subr.bf16.mxu0 0
    %891 = vmatpush1.bf16.msra.mxu0 0
    %892 = vmatprep.mubr.bf16.mxu0 0
    %893 = vmatmul.mubr.bf16.gmra.mrb[0].mxu0 %v855
    %v894 = vpop.f32.mrb[0].mxu0
    %v895 = vadd.f32 0.0, %v894
    %v896 = vpop.f32.mrb[0].mxu0
    %v897 = vpop.f32.mrb[0].mxu0
    %v898 = vpop.f32.mrb[0].mxu0
    %899 = vdwg.mxu0
    %v900 = vpack.c.bf16 %v895, %v847
    %v903 = vunpack.c.l.b16 %v35
    %v904 = vunpack.c.l.b16 %v36
    %v905 = vpack.c.b16 %v904, %v903
    %v908 = vsel %vm136, %v900, 0
    %910 = vmatprep.subr.bf16.mxu0 0
    %911 = vmatpush1.bf16.msra.mxu0 %v905
    %912 = vmatprep.subr.bf16.mxu0 0
    %913 = vmatpush1.bf16.msra.mxu0 0
    %914 = vmatprep.subr.bf16.mxu0 0
    %915 = vmatpush1.bf16.msra.mxu0 0
    %916 = vmatprep.subr.bf16.mxu0 0
    %917 = vmatpush1.bf16.msra.mxu0 0
    %918 = vmatprep.subr.bf16.mxu0 0
    %919 = vmatpush1.bf16.msra.mxu0 0
    %920 = vmatprep.subr.bf16.mxu0 0
    %921 = vmatpush1.bf16.msra.mxu0 0
    %922 = vmatprep.subr.bf16.mxu0 0
    %923 = vmatpush1.bf16.msra.mxu0 0
    %924 = vmatprep.subr.bf16.mxu0 0
    %925 = vmatpush1.bf16.msra.mxu0 0
    %926 = vmatprep.subr.bf16.mxu0 0
    %927 = vmatpush1.bf16.msra.mxu0 0
    %928 = vmatprep.subr.bf16.mxu0 0
    %929 = vmatpush1.bf16.msra.mxu0 0
    %930 = vmatprep.subr.bf16.mxu0 0
    %931 = vmatpush1.bf16.msra.mxu0 0
    %932 = vmatprep.subr.bf16.mxu0 0
    %933 = vmatpush1.bf16.msra.mxu0 0
    %934 = vmatprep.subr.bf16.mxu0 0
    %935 = vmatpush1.bf16.msra.mxu0 0
    %936 = vmatprep.subr.bf16.mxu0 0
    %937 = vmatpush1.bf16.msra.mxu0 0
    %938 = vmatprep.subr.bf16.mxu0 0
    %939 = vmatpush1.bf16.msra.mxu0 0
    %940 = vmatprep.subr.bf16.mxu0 0
    %941 = vmatpush1.bf16.msra.mxu0 0
    %942 = vmatprep.mubr.bf16.mxu0 0
    %943 = vmatmul.mubr.bf16.gmra.mrb[0].mxu0 %v908
    %v944 = vpop.f32.mrb[0].mxu0
    %v945 = vadd.f32 0.0, %v944
    %v946 = vpop.f32.mrb[0].mxu0
    %v947 = vpop.f32.mrb[0].mxu0
    %v948 = vadd.f32 0.0, %v947
    %v949 = vpop.f32.mrb[0].mxu0
    %950 = vdwg.mxu0
    %v951 = vadd.f32 %v672, %v945
    %v952 = vadd.f32 %v675, %v948
    %953 = vrot.lane.b32.xlu0 %v129, 80
    %v954 = vpop.permute.xlu0 %953
    %955 = vrot.lane.b32.xlu0 %v129, 16
    %v956 = vpop.permute.xlu0 %955
    %v958 = vsel %vm136, %v954, 0
    %v961 = vsel %vm136, %v956, 0
    %963 = vmatprep.subr.bf16.mxu0 0
    %964 = vmatpush1.bf16.xpose.msra.mxu0 %v961
    %965 = vmatprep.subr.bf16.mxu0 0
    %966 = vmatpush1.bf16.xpose.msra.mxu0 0
    %967 = vmatprep.subr.bf16.mxu0 0
    %968 = vmatpush1.bf16.xpose.msra.mxu0 0
    %969 = vmatprep.subr.bf16.mxu0 0
    %970 = vmatpush1.bf16.xpose.msra.mxu0 0
    %971 = vmatprep.subr.bf16.mxu0 0
    %972 = vmatpush1.bf16.xpose.msra.mxu0 0
    %973 = vmatprep.subr.bf16.mxu0 0
    %974 = vmatpush1.bf16.xpose.msra.mxu0 0
    %975 = vmatprep.subr.bf16.mxu0 0
    %976 = vmatpush1.bf16.xpose.msra.mxu0 0
    %977 = vmatprep.subr.bf16.mxu0 0
    %978 = vmatpush1.bf16.xpose.msra.mxu0 0
    %979 = vmatprep.subr.bf16.mxu0 0
    %980 = vmatpush1.bf16.xpose.msra.mxu0 0
    %981 = vmatprep.subr.bf16.mxu0 0
    %982 = vmatpush1.bf16.xpose.msra.mxu0 0
    %983 = vmatprep.subr.bf16.mxu0 0
    %984 = vmatpush1.bf16.xpose.msra.mxu0 0
    %985 = vmatprep.subr.bf16.mxu0 0
    %986 = vmatpush1.bf16.xpose.msra.mxu0 0
    %987 = vmatprep.subr.bf16.mxu0 0
    %988 = vmatpush1.bf16.xpose.msra.mxu0 0
    %989 = vmatprep.subr.bf16.mxu0 0
    %990 = vmatpush1.bf16.xpose.msra.mxu0 0
    %991 = vmatprep.subr.bf16.mxu0 0
    %992 = vmatpush1.bf16.xpose.msra.mxu0 0
    %993 = vmatprep.subr.bf16.mxu0 0
    %994 = vmatpush1.bf16.xpose.msra.mxu0 0
    %995 = vmatprep.mubr.bf16.mxu0 0
    %996 = vmatmul.mubr.bf16.gmra.mrb[0].mxu0 %v958
    %v997 = vpop.f32.mrb[0].mxu0
    %v998 = vadd.f32 0.0, %v997
    %v999 = vpop.f32.mrb[0].mxu0
    %v1000 = vpop.f32.mrb[0].mxu0
    %v1001 = vpop.f32.mrb[0].mxu0
    %1002 = vdwg.mxu0
    %1003 = vrot.lane.b32.xlu0 %v130, 80
    %v1004 = vpop.permute.xlu0 %1003
    %1005 = vrot.lane.b32.xlu0 %v130, 16
    %v1006 = vpop.permute.xlu0 %1005
    %v1008 = vsel %vm136, %v1004, 0
    %v1011 = vsel %vm136, %v1006, 0
    %1013 = vmatprep.subr.bf16.mxu0 0
    %1014 = vmatpush1.bf16.xpose.msra.mxu0 %v1011
    %1015 = vmatprep.subr.bf16.mxu0 0
    %1016 = vmatpush1.bf16.xpose.msra.mxu0 0
    %1017 = vmatprep.subr.bf16.mxu0 0
    %1018 = vmatpush1.bf16.xpose.msra.mxu0 0
    %1019 = vmatprep.subr.bf16.mxu0 0
    %1020 = vmatpush1.bf16.xpose.msra.mxu0 0
    %1021 = vmatprep.subr.bf16.mxu0 0
    %1022 = vmatpush1.bf16.xpose.msra.mxu0 0
    %1023 = vmatprep.subr.bf16.mxu0 0
    %1024 = vmatpush1.bf16.xpose.msra.mxu0 0
    %1025 = vmatprep.subr.bf16.mxu0 0
    %1026 = vmatpush1.bf16.xpose.msra.mxu0 0
    %1027 = vmatprep.subr.bf16.mxu0 0
    %1028 = vmatpush1.bf16.xpose.msra.mxu0 0
    %1029 = vmatprep.subr.bf16.mxu0 0
    %1030 = vmatpush1.bf16.xpose.msra.mxu0 0
    %1031 = vmatprep.subr.bf16.mxu0 0
    %1032 = vmatpush1.bf16.xpose.msra.mxu0 0
    %1033 = vmatprep.subr.bf16.mxu0 0
    %1034 = vmatpush1.bf16.xpose.msra.mxu0 0
    %1035 = vmatprep.subr.bf16.mxu0 0
    %1036 = vmatpush1.bf16.xpose.msra.mxu0 0
    %1037 = vmatprep.subr.bf16.mxu0 0
    %1038 = vmatpush1.bf16.xpose.msra.mxu0 0
    %1039 = vmatprep.subr.bf16.mxu0 0
    %1040 = vmatpush1.bf16.xpose.msra.mxu0 0
    %1041 = vmatprep.subr.bf16.mxu0 0
    %1042 = vmatpush1.bf16.xpose.msra.mxu0 0
    %1043 = vmatprep.subr.bf16.mxu0 0
    %1044 = vmatpush1.bf16.xpose.msra.mxu0 0
    %1045 = vmatprep.mubr.bf16.mxu0 0
    %1046 = vmatmul.mubr.bf16.gmra.mrb[0].mxu0 %v1008
    %v1047 = vpop.f32.mrb[0].mxu0
    %v1048 = vadd.f32 0.0, %v1047
    %v1049 = vpop.f32.mrb[0].mxu0
    %v1050 = vpop.f32.mrb[0].mxu0
    %v1051 = vpop.f32.mrb[0].mxu0
    %1052 = vdwg.mxu0
    %v1053 = vmul.f32 %v998, 0.25
    %v1054 = vmul.f32 %v1048, 0.25
    %v1055 = vsel %vm234, %v1053, -inf
    %1056 = vmax.xlane.f32.xlu0 %v1055
    %v1057 = vpop.xlane.xlu0 %1056
    %v1058 = vsel %vm234, %v1054, -inf
    %1059 = vmax.xlane.f32.xlu0 %v1058
    %v1060 = vpop.xlane.xlu0 %1059
    %v1061 = vsub.f32 %v1053, %v1057
    %v1062 = vsub.f32 %v1054, %v1060
    %v1063 = vmul.f32 %v1061, 1.442695
    %v1064 = vpow.pop %v1063
    %v1065 = vmul.f32 %v1062, 1.442695
    %v1066 = vpow.pop %v1065
    %v1067 = vsel %vm234, %v1064, 0.0
    %1068 = vadd.xlane.f32.xlu0 %v1067
    %v1069 = vpop.xlane.xlu0 %1068
    %v1070 = vsel %vm234, %v1066, 0.0
    %1071 = vadd.xlane.f32.xlu0 %v1070
    %v1072 = vpop.xlane.xlu0 %1071
    %v1073 = vrcp.pop %v1069
    %v1074 = vmul.f32 %v1064, %v1073
    %v1075 = vrcp.pop %v1072
    %v1076 = vmul.f32 %v1066, %v1075
    %v1077 = vpack.c.bf16 %v1074, %v1074
    %v1078 = vpack.c.bf16 %v1076, %v1076
    %1079 = vrot.lane.b32.xlu0 %v131, 80
    %v1080 = vpop.permute.xlu0 %1079
    %v1082 = vsel %vm234, %v1077, 0
    %v1085 = vsel %vm262, %v1080, 0
    %1087 = vmatprep.subr.bf16.mxu0 0
    %1088 = vmatpush1.bf16.msra.mxu0 %v1085
    %1089 = vmatprep.subr.bf16.mxu0 0
    %1090 = vmatpush1.bf16.msra.mxu0 0
    %1091 = vmatprep.subr.bf16.mxu0 0
    %1092 = vmatpush1.bf16.msra.mxu0 0
    %1093 = vmatprep.subr.bf16.mxu0 0
    %1094 = vmatpush1.bf16.msra.mxu0 0
    %1095 = vmatprep.subr.bf16.mxu0 0
    %1096 = vmatpush1.bf16.msra.mxu0 0
    %1097 = vmatprep.subr.bf16.mxu0 0
    %1098 = vmatpush1.bf16.msra.mxu0 0
    %1099 = vmatprep.subr.bf16.mxu0 0
    %1100 = vmatpush1.bf16.msra.mxu0 0
    %1101 = vmatprep.subr.bf16.mxu0 0
    %1102 = vmatpush1.bf16.msra.mxu0 0
    %1103 = vmatprep.subr.bf16.mxu0 0
    %1104 = vmatpush1.bf16.msra.mxu0 0
    %1105 = vmatprep.subr.bf16.mxu0 0
    %1106 = vmatpush1.bf16.msra.mxu0 0
    %1107 = vmatprep.subr.bf16.mxu0 0
    %1108 = vmatpush1.bf16.msra.mxu0 0
    %1109 = vmatprep.subr.bf16.mxu0 0
    %1110 = vmatpush1.bf16.msra.mxu0 0
    %1111 = vmatprep.subr.bf16.mxu0 0
    %1112 = vmatpush1.bf16.msra.mxu0 0
    %1113 = vmatprep.subr.bf16.mxu0 0
    %1114 = vmatpush1.bf16.msra.mxu0 0
    %1115 = vmatprep.subr.bf16.mxu0 0
    %1116 = vmatpush1.bf16.msra.mxu0 0
    %1117 = vmatprep.subr.bf16.mxu0 0
    %1118 = vmatpush1.bf16.msra.mxu0 0
    %1119 = vmatprep.mubr.bf16.mxu0 0
    %1120 = vmatmul.mubr.bf16.gmra.mrb[0].mxu0 %v1082
    %v1121 = vpop.f32.mrb[0].mxu0
    %v1122 = vadd.f32 0.0, %v1121
    %v1123 = vpop.f32.mrb[0].mxu0
    %v1124 = vpop.f32.mrb[0].mxu0
    %v1125 = vpop.f32.mrb[0].mxu0
    %1126 = vdwg.mxu0
    %1127 = vrot.lane.b32.xlu0 %v132, 80
    %v1128 = vpop.permute.xlu0 %1127
    %v1130 = vsel %vm234, %v1078, 0
    %v1133 = vsel %vm262, %v1128, 0
    %1135 = vmatprep.subr.bf16.mxu0 0
    %1136 = vmatpush1.bf16.msra.mxu0 %v1133
    %1137 = vmatprep.subr.bf16.mxu0 0
    %1138 = vmatpush1.bf16.msra.mxu0 0
    %1139 = vmatprep.subr.bf16.mxu0 0
    %1140 = vmatpush1.bf16.msra.mxu0 0
    %1141 = vmatprep.subr.bf16.mxu0 0
    %1142 = vmatpush1.bf16.msra.mxu0 0
    %1143 = vmatprep.subr.bf16.mxu0 0
    %1144 = vmatpush1.bf16.msra.mxu0 0
    %1145 = vmatprep.subr.bf16.mxu0 0
    %1146 = vmatpush1.bf16.msra.mxu0 0
    %1147 = vmatprep.subr.bf16.mxu0 0
    %1148 = vmatpush1.bf16.msra.mxu0 0
    %1149 = vmatprep.subr.bf16.mxu0 0
    %1150 = vmatpush1.bf16.msra.mxu0 0
    %1151 = vmatprep.subr.bf16.mxu0 0
    %1152 = vmatpush1.bf16.msra.mxu0 0
    %1153 = vmatprep.subr.bf16.mxu0 0
    %1154 = vmatpush1.bf16.msra.mxu0 0
    %1155 = vmatprep.subr.bf16.mxu0 0
    %1156 = vmatpush1.bf16.msra.mxu0 0
    %1157 = vmatprep.subr.bf16.mxu0 0
    %1158 = vmatpush1.bf16.msra.mxu0 0
    %1159 = vmatprep.subr.bf16.mxu0 0
    %1160 = vmatpush1.bf16.msra.mxu0 0
    %1161 = vmatprep.subr.bf16.mxu0 0
    %1162 = vmatpush1.bf16.msra.mxu0 0
    %1163 = vmatprep.subr.bf16.mxu0 0
    %1164 = vmatpush1.bf16.msra.mxu0 0
    %1165 = vmatprep.subr.bf16.mxu0 0
    %1166 = vmatpush1.bf16.msra.mxu0 0
    %1167 = vmatprep.mubr.bf16.mxu0 0
    %1168 = vmatmul.mubr.bf16.gmra.mrb[0].mxu0 %v1130
    %v1169 = vpop.f32.mrb[0].mxu0
    %v1170 = vadd.f32 0.0, %v1169
    %v1171 = vpop.f32.mrb[0].mxu0
    %v1172 = vpop.f32.mrb[0].mxu0
    %v1173 = vpop.f32.mrb[0].mxu0
    %1174 = vdwg.mxu0
    %v1175 = vpack.c.bf16 %v1170, %v1122
    %v1178 = vunpack.c.l.b16 %v37
    %v1179 = vunpack.c.l.b16 %v38
    %v1180 = vpack.c.b16 %v1179, %v1178
    %v1183 = vsel %vm136, %v1175, 0
    %1185 = vmatprep.subr.bf16.mxu0 0
    %1186 = vmatpush1.bf16.msra.mxu0 %v1180
    %1187 = vmatprep.subr.bf16.mxu0 0
    %1188 = vmatpush1.bf16.msra.mxu0 0
    %1189 = vmatprep.subr.bf16.mxu0 0
    %1190 = vmatpush1.bf16.msra.mxu0 0
    %1191 = vmatprep.subr.bf16.mxu0 0
    %1192 = vmatpush1.bf16.msra.mxu0 0
    %1193 = vmatprep.subr.bf16.mxu0 0
    %1194 = vmatpush1.bf16.msra.mxu0 0
    %1195 = vmatprep.subr.bf16.mxu0 0
    %1196 = vmatpush1.bf16.msra.mxu0 0
    %1197 = vmatprep.subr.bf16.mxu0 0
    %1198 = vmatpush1.bf16.msra.mxu0 0
    %1199 = vmatprep.subr.bf16.mxu0 0
    %1200 = vmatpush1.bf16.msra.mxu0 0
    %1201 = vmatprep.subr.bf16.mxu0 0
    %1202 = vmatpush1.bf16.msra.mxu0 0
    %1203 = vmatprep.subr.bf16.mxu0 0
    %1204 = vmatpush1.bf16.msra.mxu0 0
    %1205 = vmatprep.subr.bf16.mxu0 0
    %1206 = vmatpush1.bf16.msra.mxu0 0
    %1207 = vmatprep.subr.bf16.mxu0 0
    %1208 = vmatpush1.bf16.msra.mxu0 0
    %1209 = vmatprep.subr.bf16.mxu0 0
    %1210 = vmatpush1.bf16.msra.mxu0 0
    %1211 = vmatprep.subr.bf16.mxu0 0
    %1212 = vmatpush1.bf16.msra.mxu0 0
    %1213 = vmatprep.subr.bf16.mxu0 0
    %1214 = vmatpush1.bf16.msra.mxu0 0
    %1215 = vmatprep.subr.bf16.mxu0 0
    %1216 = vmatpush1.bf16.msra.mxu0 0
    %1217 = vmatprep.mubr.bf16.mxu0 0
    %1218 = vmatmul.mubr.bf16.gmra.mrb[0].mxu0 %v1183
    %v1219 = vpop.f32.mrb[0].mxu0
    %v1220 = vadd.f32 0.0, %v1219
    %v1221 = vpop.f32.mrb[0].mxu0
    %v1222 = vpop.f32.mrb[0].mxu0
    %v1223 = vadd.f32 0.0, %v1222
    %v1224 = vpop.f32.mrb[0].mxu0
    %1225 = vdwg.mxu0
    %v1226 = vadd.f32 %v951, %v1220
    %v1227 = vadd.f32 %v952, %v1223
    %v1228 = vlaneseq
    %v1229 = vshrl.u32 %v1228, 7
    %v1230 = vsub.s32 1, %v1229
    %v1231 = vrot.slane %v51, %v1230
    %v1232 = vadd.f32 %v1226, %v1231
    %v1233 = vadd.f32 %v1227, %v1231
    %v1234 = vadd.f32 %v25, %v1232
    %v1235 = vadd.f32 %v26, %v1233
    %v1236 = vsel %vm82, %v1234, 0.0
    %1237 = vadd.xlane.f32.xlu0 %v1236
    %v1238 = vpop.xlane.xlu0 %1237
    %v1239 = vsel %vm82, %v1235, 0.0
    %1240 = vadd.xlane.f32.xlu0 %v1239
    %v1241 = vpop.xlane.xlu0 %1240
    %v1242 = vrcp.pop 32.0
    %v1243 = vmul.f32 %v1238, %v1242
    %v1244 = vmul.f32 %v1241, %v1242
    %v1245 = vsub.f32 %v1234, %v1243
    %v1246 = vsub.f32 %v1235, %v1244
    %v1247 = vmul.f32 %v1245, %v1245
    %v1248 = vmul.f32 %v1246, %v1246
    %v1249 = vsel %vm82, %v1247, 0.0
    %1250 = vadd.xlane.f32.xlu0 %v1249
    %v1251 = vpop.xlane.xlu0 %1250
    %v1252 = vsel %vm82, %v1248, 0.0
    %1253 = vadd.xlane.f32.xlu0 %v1252
    %v1254 = vpop.xlane.xlu0 %1253
    %v1255 = vmul.f32 %v1251, %v1242
    %v1256 = vmul.f32 %v1254, %v1242
    %v1257 = vadd.f32 %v1255, 1e-05
    %v1258 = vadd.f32 %v1256, 1e-05
    %v1259 = vrsqrt.pop %v1257
    %v1260 = vrsqrt.pop %v1258
    %v1261 = vmul.f32 %v1245, %v1259
    %v1262 = vmul.f32 %v1246, %v1260
    %v1263 = vlaneseq
    %v1264 = vshrl.u32 %v1263, 7
    %v1265 = vsub.s32 2, %v1264
    %v1266 = vrot.slane %v51, %v1265
    %v1267 = vmul.f32 %v1261, %v1266
    %v1268 = vmul.f32 %v1262, %v1266
    %v1269 = vlaneseq
    %v1270 = vshrl.u32 %v1269, 7
    %v1271 = vsub.s32 3, %v1270
    %v1272 = vrot.slane %v51, %v1271
    %v1273 = vadd.f32 %v1267, %v1272
    %v1274 = vadd.f32 %v1268, %v1272
    %v1275 = vpack.c.bf16 %v1274, %v1273
    %v1276 = vlaneseq
    %v1277 = vshrl.u32 %v1276, 7
    %v1278 = vsub.s32 6, %v1277
    %v1279 = vrot.slane %v51, %v1278
    %v1284 = vunpack.c.l.b16 %v39
    %v1285 = vunpack.c.l.b16 %v40
    %v1286 = vunpack.c.l.b16 %v41
    %v1287 = vunpack.c.l.b16 %v42
    %v1288 = vpack.c.b16 %v1285, %v1284
    %v1289 = vpack.c.b16 %v1287, %v1286
    %v1293 = vsel %vm82, %v1275, 0
    %1295 = vmatprep.subr.bf16.mxu0 0
    %1296 = vmatpush1.bf16.msra.mxu0 %v1288
    %1297 = vmatprep.subr.bf16.mxu0 0
    %1298 = vmatpush1.bf16.msra.mxu0 %v1289
    %1299 = vmatprep.subr.bf16.mxu0 0
    %1300 = vmatpush1.bf16.msra.mxu0 0
    %1301 = vmatprep.subr.bf16.mxu0 0
    %1302 = vmatpush1.bf16.msra.mxu0 0
    %1303 = vmatprep.subr.bf16.mxu0 0
    %1304 = vmatpush1.bf16.msra.mxu0 0
    %1305 = vmatprep.subr.bf16.mxu0 0
    %1306 = vmatpush1.bf16.msra.mxu0 0
    %1307 = vmatprep.subr.bf16.mxu0 0
    %1308 = vmatpush1.bf16.msra.mxu0 0
    %1309 = vmatprep.subr.bf16.mxu0 0
    %1310 = vmatpush1.bf16.msra.mxu0 0
    %1311 = vmatprep.subr.bf16.mxu0 0
    %1312 = vmatpush1.bf16.msra.mxu0 0
    %1313 = vmatprep.subr.bf16.mxu0 0
    %1314 = vmatpush1.bf16.msra.mxu0 0
    %1315 = vmatprep.subr.bf16.mxu0 0
    %1316 = vmatpush1.bf16.msra.mxu0 0
    %1317 = vmatprep.subr.bf16.mxu0 0
    %1318 = vmatpush1.bf16.msra.mxu0 0
    %1319 = vmatprep.subr.bf16.mxu0 0
    %1320 = vmatpush1.bf16.msra.mxu0 0
    %1321 = vmatprep.subr.bf16.mxu0 0
    %1322 = vmatpush1.bf16.msra.mxu0 0
    %1323 = vmatprep.subr.bf16.mxu0 0
    %1324 = vmatpush1.bf16.msra.mxu0 0
    %1325 = vmatprep.subr.bf16.mxu0 0
    %1326 = vmatpush1.bf16.msra.mxu0 0
    %1327 = vmatprep.mubr.bf16.mxu0 0
    %1328 = vmatmul.mubr.bf16.gmra.mrb[0].mxu0 %v1293
    %v1329 = vpop.f32.mrb[0].mxu0
    %v1330 = vadd.f32 %v1279, %v1329
    %v1331 = vpop.f32.mrb[0].mxu0
    %v1332 = vpop.f32.mrb[0].mxu0
    %v1333 = vadd.f32 %v1279, %v1332
    %v1334 = vpop.f32.mrb[0].mxu0
    %1335 = vdwg.mxu0
    %v1336 = vmax.f32 %v1330, 0.0
    %v1337 = vmax.f32 %v1333, 0.0
    %v1338 = vpack.c.bf16 %v1337, %v1336
    %v1339 = vlaneseq
    %v1340 = vshrl.u32 %v1339, 7
    %v1341 = vsub.s32 7, %v1340
    %v1342 = vrot.slane %v51, %v1341
    %v1351 = vunpack.c.l.b16 %v43
    %v1352 = vunpack.c.l.b16 %v44
    %v1353 = vunpack.c.l.b16 %v45
    %v1354 = vunpack.c.l.b16 %v46
    %v1355 = vunpack.c.l.b16 %v47
    %v1356 = vunpack.c.l.b16 %v48
    %v1357 = vunpack.c.l.b16 %v49
    %v1358 = vunpack.c.l.b16 %v50
    %v1359 = vpack.c.b16 %v1352, %v1351
    %v1360 = vpack.c.b16 %v1354, %v1353
    %v1361 = vpack.c.b16 %v1356, %v1355
    %v1362 = vpack.c.b16 %v1358, %v1357
    %vm1367 = vcmask 523264
    %v1369 = vsel %vm1367, %v1338, 0
    %1371 = vmatprep.subr.bf16.mxu0 0
    %1372 = vmatpush1.bf16.msra.mxu0 %v1359
    %1373 = vmatprep.subr.bf16.mxu0 0
    %1374 = vmatpush1.bf16.msra.mxu0 %v1360
    %1375 = vmatprep.subr.bf16.mxu0 0
    %1376 = vmatpush1.bf16.msra.mxu0 %v1361
    %1377 = vmatprep.subr.bf16.mxu0 0
    %1378 = vmatpush1.bf16.msra.mxu0 %v1362
    %1379 = vmatprep.subr.bf16.mxu0 0
    %1380 = vmatpush1.bf16.msra.mxu0 0
    %1381 = vmatprep.subr.bf16.mxu0 0
    %1382 = vmatpush1.bf16.msra.mxu0 0
    %1383 = vmatprep.subr.bf16.mxu0 0
    %1384 = vmatpush1.bf16.msra.mxu0 0
    %1385 = vmatprep.subr.bf16.mxu0 0
    %1386 = vmatpush1.bf16.msra.mxu0 0
    %1387 = vmatprep.subr.bf16.mxu0 0
    %1388 = vmatpush1.bf16.msra.mxu0 0
    %1389 = vmatprep.subr.bf16.mxu0 0
    %1390 = vmatpush1.bf16.msra.mxu0 0
    %1391 = vmatprep.subr.bf16.mxu0 0
    %1392 = vmatpush1.bf16.msra.mxu0 0
    %1393 = vmatprep.subr.bf16.mxu0 0
    %1394 = vmatpush1.bf16.msra.mxu0 0
    %1395 = vmatprep.subr.bf16.mxu0 0
    %1396 = vmatpush1.bf16.msra.mxu0 0
    %1397 = vmatprep.subr.bf16.mxu0 0
    %1398 = vmatpush1.bf16.msra.mxu0 0
    %1399 = vmatprep.subr.bf16.mxu0 0
    %1400 = vmatpush1.bf16.msra.mxu0 0
    %1401 = vmatprep.subr.bf16.mxu0 0
    %1402 = vmatpush1.bf16.msra.mxu0 0
    %1403 = vmatprep.mubr.bf16.mxu0 0
    %1404 = vmatmul.mubr.bf16.gmra.mrb[0].mxu0 %v1369
    %v1405 = vpop.f32.mrb[0].mxu0
    %v1406 = vadd.f32 %v1342, %v1405
    %v1407 = vpop.f32.mrb[0].mxu0
    %v1408 = vpop.f32.mrb[0].mxu0
    %v1409 = vadd.f32 %v1342, %v1408
    %v1410 = vpop.f32.mrb[0].mxu0
    %1411 = vdwg.mxu0
    %v1412 = vadd.f32 %v1273, %v1406
    %v1413 = vadd.f32 %v1274, %v1409
    %v1414 = vsel %vm82, %v1412, 0.0
    %1415 = vadd.xlane.f32.xlu0 %v1414
    %v1416 = vpop.xlane.xlu0 %1415
    %v1417 = vsel %vm82, %v1413, 0.0
    %1418 = vadd.xlane.f32.xlu0 %v1417
    %v1419 = vpop.xlane.xlu0 %1418
    %v1420 = vmul.f32 %v1416, %v1242
    %v1421 = vmul.f32 %v1419, %v1242
    %v1422 = vsub.f32 %v1412, %v1420
    %v1423 = vsub.f32 %v1413, %v1421
    %v1424 = vmul.f32 %v1422, %v1422
    %v1425 = vmul.f32 %v1423, %v1423
    %v1426 = vsel %vm82, %v1424, 0.0
    %1427 = vadd.xlane.f32.xlu0 %v1426
    %v1428 = vpop.xlane.xlu0 %1427
    %v1429 = vsel %vm82, %v1425, 0.0
    %1430 = vadd.xlane.f32.xlu0 %v1429
    %v1431 = vpop.xlane.xlu0 %1430
    %v1432 = vmul.f32 %v1428, %v1242
    %v1433 = vmul.f32 %v1431, %v1242
    %v1434 = vadd.f32 %v1432, 1e-05
    %v1435 = vadd.f32 %v1433, 1e-05
    %v1436 = vrsqrt.pop %v1434
    %v1437 = vrsqrt.pop %v1435
    %v1438 = vmul.f32 %v1422, %v1436
    %v1439 = vmul.f32 %v1423, %v1437
    %v1440 = vlaneseq
    %v1441 = vshrl.u32 %v1440, 7
    %v1442 = vsub.s32 4, %v1441
    %v1443 = vrot.slane %v51, %v1442
    %v1444 = vmul.f32 %v1438, %v1443
    %v1445 = vmul.f32 %v1439, %v1443
    %v1446 = vlaneseq
    %v1447 = vshrl.u32 %v1446, 7
    %v1448 = vsub.s32 5, %v1447
    %v1449 = vrot.slane %v51, %v1448
    %v1450 = vadd.f32 %v1444, %v1449
    %v1451 = vadd.f32 %v1445, %v1449
    %1452 = vst.msk [vmem:[#allocation2] sm:$0xff] %vm82, %v1450
    %1453 = vst.msk [vmem:[#allocation2 + $0x8] sm:$0xff] %vm82, %v1451
    // Predicated region
    $region26: #{tpu_custom_call.1} parent=1 // pred_check
      _
    $region27: #{tpu_custom_call.1} parent=1 // pred_check_branch
      %1455 = sbr.rel (0) target = $region29
    $region28: #{tpu_custom_call.1} parent=1 // pred_region
      %s1457 = ssub.s32 256, 256
      %1458 = vsyncadd [#allocation3], %s1457
      %s1459 = sshll.u32 [#allocation2], 4
      %s1460 = int_to_ptr.vmem [resolvable:$true] %s1459
      %1465 = dma.vmem_to_hbm [thread:$0]  %s1460, 256, %s6, [#allocation3], 128, 128, 8
    $region29: #{tpu_custom_call.1} parent=1 // pred_fallthru
      _
    // Predicated region
    $region30: #{tpu_custom_call.1} parent=1 // pred_check
      _
    $region31: #{tpu_custom_call.1} parent=1 // pred_check_branch
      %1467 = sbr.rel (0) target = $region33
    $region32: #{tpu_custom_call.1} parent=1 // pred_region
      %1468 = dma.done [#allocation3], 256
    $region33: #{tpu_custom_call.1} parent=1 // pred_fallthru
      _
    %1469 = vsyncpa [#allocation3], 1

</llo_original>
